<compile_context>
chip_gen: v7x
topology: tpu7x:2x2x1
jax: 0.10.0
libtpu: 0.0.40
codegen_flags: <defaults>
</compile_context>

<pallas_src>
import jax
import jax.numpy as jnp
import numpy as np
from jax.experimental import pallas as pl
from jax.experimental.pallas import tpu as pltpu

INPUT_DIM = 5
HIDDEN_DIM = 64
H = HIDDEN_DIM
G = 2 * H          # 128: lane-aligned width of one gate slot / padded hidden state
MATMUL_DTYPE = jnp.bfloat16   # bf16 MXU operands (v6e/v7x); use jnp.float32 for exact f32


# ---------------------------------------------------------------------------
# Kernel
# ---------------------------------------------------------------------------
def gru_kernel(x_ref, w1_ref, b1_ref, w2_ref, b2_ref, wfc_ref, bfc_ref, out_ref):
    T, B, _ = x_ref.shape

    # Hoist all parameter loads out of the recurrence (read VMEM -> vregs once).
    w1 = w1_ref[...]
    b1 = b1_ref[...]
    w2 = w2_ref[...]
    b2 = b2_ref[...]

    def cell(xin, h_prev, w, b):
        # One fused MXU push: (B, 128) @ (128, 512) -> [a_r | a_z | gi_n | gh_n].
        # Gate math stays in f32 on the VPU/EUP; only matmul operands are bf16.
        g = jnp.dot(xin.astype(w.dtype), w, preferred_element_type=jnp.float32) + b
        r = jax.nn.sigmoid(g[:, 0 * G:1 * G])                 # 128-lane-aligned slices
        z = jax.nn.sigmoid(g[:, 1 * G:2 * G])
        n = jnp.tanh(g[:, 2 * G:3 * G] + r * g[:, 3 * G:4 * G])
        return (1.0 - z) * n + z * h_prev                     # padded lanes stay exactly 0

    def step(t, carry):
        h1, h2 = carry
        xin1 = x_ref[t] + h1      # x lives in lanes [H, H+D); h1 in lanes [0, H)  -> pure add
        h1 = cell(xin1, h1, w1, b1)
        xin2 = h1 + h2            # h1 in lanes [0, H); h2 in lanes [H, 2H)        -> pure add
        h2 = cell(xin2, h2, w2, b2)
        return h1, h2

    h0 = jnp.zeros((B, 2 * H), jnp.float32)
    _, h2 = jax.lax.fori_loop(0, T, step, (h0, h0), unroll=True)

    # fc head (once): h2's live lanes are [H, 2H); wfc_row is packed to match.
    out = jnp.sum(h2 * wfc_ref[...], axis=1, keepdims=True) + bfc_ref[...]
    out_ref[...] = out.astype(out_ref.dtype)


# ---------------------------------------------------------------------------
# Host-side wrapper
# ---------------------------------------------------------------------------
def gru_model_forward(x, packed):
    """x: [B, T, D] (batch_first, like the PyTorch module). Returns [B, 1]."""
    B, T, D = x.shape
    W1, b1, W2, b2, wfc_row, bfc = packed

    # Time-major and padded to 2H lanes; x features occupy lanes [H, H+D) so the
    # fused layer-1 input inside the kernel is just x_pad[t] + h1 (disjoint lanes).
    xt = jnp.transpose(x, (1, 0, 2)).astype(jnp.float32)
    x_pad = jnp.zeros((T, B, 2 * H), jnp.float32).at[:, :, H:H + D].set(xt)

    return pl.pallas_call(
        gru_kernel,
        out_shape=jax.ShapeDtypeStruct((B, 1), jnp.float32),
        in_specs=[pl.BlockSpec(memory_space=pltpu.MemorySpace.VMEM)] * 7,
        out_specs=pl.BlockSpec(memory_space=pltpu.MemorySpace.VMEM),
    )(x_pad, W1, b1, W2, b2, wfc_row, bfc)


# ---------------------------------------------------------------------------
# Parameters: PyTorch-style init + packing into the fused, lane-aligned layout
# ---------------------------------------------------------------------------
def init_params(key):
    """PyTorch-style init U(-1/sqrt(H), 1/sqrt(H)); GRU weights pre-transposed to
    (in, 3H) with gate order [r | z | n], biases as (1, 3H); fc as (H,1)/(1,1)."""
    k = 1.0 / np.sqrt(H)
    keys = jax.random.split(key, 10)

    def u(kk, shape):
        return jax.random.uniform(kk, shape, jnp.float32, minval=-k, maxval=k)

    wi1 = u(keys[0], (3 * H, INPUT_DIM)).T           # (D, 3H)
    wh1 = u(keys[1], (3 * H, H)).T                   # (H, 3H)
    bi1 = u(keys[2], (3 * H,)).reshape(1, 3 * H)
    bh1 = u(keys[3], (3 * H,)).reshape(1, 3 * H)
    wi2 = u(keys[4], (3 * H, H)).T                   # (H, 3H)
    wh2 = u(keys[5], (3 * H, H)).T                   # (H, 3H)
    bi2 = u(keys[6], (3 * H,)).reshape(1, 3 * H)
    bh2 = u(keys[7], (3 * H,)).reshape(1, 3 * H)
    wfc = u(keys[8], (1, H)).T                       # (H, 1)
    bfc = u(keys[9], (1,)).reshape(1, 1)
    return (wi1, wh1, bi1, bh1, wi2, wh2, bi2, bh2, wfc, bfc)


def pack_params(params):
    """Pack GRU params into the fused block-matrix / lane-aligned kernel layout."""
    wi1, wh1, bi1, bh1, wi2, wh2, bi2, bh2, wfc, bfc = [np.asarray(p) for p in params]

    def pack_layer(wi, wh, bi, bh, x_rows, h_rows, out_off):
        # wi: (Din, 3H) input->gates, wh: (H, 3H) hidden->gates, bi/bh: (1, 3H).
        # Column slots (each G=128 lanes wide, data at lanes [out_off, out_off+H)):
        #   slot 0: r (input+hidden contributions summed, biases folded)
        #   slot 1: z (summed, biases folded)
        #   slot 2: n input half   (gi_n + bi_n)
        #   slot 3: n hidden half  (gh_n + bh_n)
        din = wi.shape[0]
        W = np.zeros((2 * H, 4 * G), np.float32)
        b = np.zeros((1, 4 * G), np.float32)
        for gate in (0, 1):                               # r, z
            c = gate * G + out_off
            W[x_rows:x_rows + din, c:c + H] = wi[:, gate * H:(gate + 1) * H]
            W[h_rows:h_rows + H,   c:c + H] = wh[:, gate * H:(gate + 1) * H]
            b[0, c:c + H] = bi[0, gate * H:(gate + 1) * H] + bh[0, gate * H:(gate + 1) * H]
        c = 2 * G + out_off                               # n, input half
        W[x_rows:x_rows + din, c:c + H] = wi[:, 2 * H:3 * H]
        b[0, c:c + H] = bi[0, 2 * H:3 * H]
        c = 3 * G + out_off                               # n, hidden half
        W[h_rows:h_rows + H, c:c + H] = wh[:, 2 * H:3 * H]
        b[0, c:c + H] = bh[0, 2 * H:3 * H]
        return W, b

    # Layer 1: x rows at [H, H+D), h1 rows at [0, H); outputs land in lanes [0, H).
    W1, b1 = pack_layer(wi1, wh1, bi1, bh1, x_rows=H, h_rows=0, out_off=0)
    # Layer 2: h1 ("input") rows at [0, H), h2 rows at [H, 2H); outputs in lanes [H, 2H).
    W2, b2 = pack_layer(wi2, wh2, bi2, bh2, x_rows=0, h_rows=H, out_off=H)

    wfc_row = np.zeros((1, 2 * H), np.float32)
    wfc_row[0, H:2 * H] = wfc[:, 0]

    return (jnp.asarray(W1, MATMUL_DTYPE), jnp.asarray(b1, jnp.float32),
            jnp.asarray(W2, MATMUL_DTYPE), jnp.asarray(b2, jnp.float32),
            jnp.asarray(wfc_row, jnp.float32), jnp.asarray(bfc, jnp.float32))


# ---------------------------------------------------------------------------
# Pure-JAX f32 reference of the PyTorch forward pass (for correctness check)
# ---------------------------------------------------------------------------
def gru_model_ref(x, params):
    wi1, wh1, bi1, bh1, wi2, wh2, bi2, bh2, wfc, bfc = params
    B, T, D = x.shape

    def cell(x_t, h, wi, wh, bi, bh):
        gi = x_t @ wi + bi
        gh = h @ wh + bh
        r = jax.nn.sigmoid(gi[:, :H] + gh[:, :H])
        z = jax.nn.sigmoid(gi[:, H:2 * H] + gh[:, H:2 * H])
        n = jnp.tanh(gi[:, 2 * H:] + r * gh[:, 2 * H:])
        return (1.0 - z) * n + z * h

    h1 = jnp.zeros((B, H), jnp.float32)
    h2 = jnp.zeros((B, H), jnp.float32)
    for t in range(T):
        h1 = cell(x[:, t, :], h1, wi1, wh1, bi1, bh1)
        h2 = cell(h1, h2, wi2, wh2, bi2, bh2)
    return h2 @ wfc + bfc


if __name__ == "__main__":
    B, T, D = 2, 8, INPUT_DIM
    key = jax.random.PRNGKey(0)
    k_x, k_p = jax.random.split(key)
    x = jax.random.normal(k_x, (B, T, D), jnp.float32)
    params = init_params(k_p)
    packed = pack_params(params)

    out = jax.block_until_ready(gru_model_forward(x, packed))
    ref = jax.block_until_ready(gru_model_ref(x, params))

    assert out.shape == (B, 1), out.shape
    # bf16 MXU operands (per perf guidance) -> slightly looser tolerance vs f32 ref.
    tol = 2e-2 if MATMUL_DTYPE == jnp.bfloat16 else 1e-3
    np.testing.assert_allclose(np.asarray(out), np.asarray(ref), rtol=tol, atol=tol)

    print("KERNEL_OK")
</pallas_src>

<mosaic_0001>
module attributes {stable_mosaic.version = 11 : i64} {
  func.func @gru_kernel(%arg0: memref<8x2x128xf32, #tpu.memory_space<vmem>>, %arg1: memref<128x512xbf16, #tpu.memory_space<vmem>>, %arg2: memref<1x512xf32, #tpu.memory_space<vmem>>, %arg3: memref<128x512xbf16, #tpu.memory_space<vmem>>, %arg4: memref<1x512xf32, #tpu.memory_space<vmem>>, %arg5: memref<1x128xf32, #tpu.memory_space<vmem>>, %arg6: memref<1x1xf32, #tpu.memory_space<vmem>>, %arg7: memref<2x1xf32, #tpu.memory_space<vmem>>) attributes {dimension_semantics = [], scalar_prefetch = 0 : i64, scratch_operands = 0 : i64, tpu.core_type = #tpu.core_type<tc>} {
    %c0 = arith.constant 0 : index
    %c0_0 = arith.constant 0 : index
    %0 = vector.load %arg1[%c0, %c0_0] : memref<128x512xbf16, #tpu.memory_space<vmem>>, vector<128x512xbf16>
    %c0_1 = arith.constant 0 : index
    %c0_2 = arith.constant 0 : index
    %1 = vector.load %arg2[%c0_1, %c0_2] : memref<1x512xf32, #tpu.memory_space<vmem>>, vector<1x512xf32>
    %c0_3 = arith.constant 0 : index
    %c0_4 = arith.constant 0 : index
    %2 = vector.load %arg3[%c0_3, %c0_4] : memref<128x512xbf16, #tpu.memory_space<vmem>>, vector<128x512xbf16>
    %c0_5 = arith.constant 0 : index
    %c0_6 = arith.constant 0 : index
    %3 = vector.load %arg4[%c0_5, %c0_6] : memref<1x512xf32, #tpu.memory_space<vmem>>, vector<1x512xf32>
    %cst = arith.constant 0.000000e+00 : f32
    %4 = vector.broadcast %cst : f32 to vector<2x128xf32>
    %c0_i32 = arith.constant 0 : i32
    %5 = arith.index_cast %c0_i32 : i32 to index
    %c0_7 = arith.constant 0 : index
    %c0_8 = arith.constant 0 : index
    %6 = vector.load %arg0[%5, %c0_7, %c0_8] : memref<8x2x128xf32, #tpu.memory_space<vmem>>, vector<1x2x128xf32>
    %7 = vector.shape_cast %6 : vector<1x2x128xf32> to vector<2x128xf32>
    %8 = arith.addf %7, %4 : vector<2x128xf32>
    %9 = arith.truncf %8 : vector<2x128xf32> to vector<2x128xbf16>
    %cst_9 = arith.constant dense<0.000000e+00> : vector<2x512xf32>
    %10 = tpu.matmul %9, %0, %cst_9 {dimension_numbers = #tpu.dot_dimension_numbers<[1], [0], [0], [1], [0, 0, 1, 1], [], []>} : vector<2x128xbf16>, vector<128x512xbf16>, vector<2x512xf32> -> vector<2x512xf32>
    %11 = vector.broadcast %1 : vector<1x512xf32> to vector<2x512xf32>
    %12 = arith.addf %10, %11 : vector<2x512xf32>
    %13 = vector.extract_strided_slice %12 {offsets = [0, 0], sizes = [2, 128], strides = [1, 1]} : vector<2x512xf32> to vector<2x128xf32>
    %14 = arith.negf %13 : vector<2x128xf32>
    %15 = math.exp %14 : vector<2x128xf32>
    %cst_10 = arith.constant 1.000000e+00 : f32
    %16 = vector.broadcast %cst_10 : f32 to vector<2x128xf32>
    %17 = arith.addf %16, %15 : vector<2x128xf32>
    %18 = arith.divf %16, %17 : vector<2x128xf32>
    %19 = vector.extract_strided_slice %12 {offsets = [0, 128], sizes = [2, 128], strides = [1, 1]} : vector<2x512xf32> to vector<2x128xf32>
    %20 = arith.negf %19 : vector<2x128xf32>
    %21 = math.exp %20 : vector<2x128xf32>
    %cst_11 = arith.constant 1.000000e+00 : f32
    %22 = vector.broadcast %cst_11 : f32 to vector<2x128xf32>
    %23 = arith.addf %22, %21 : vector<2x128xf32>
    %24 = arith.divf %22, %23 : vector<2x128xf32>
    %25 = vector.extract_strided_slice %12 {offsets = [0, 256], sizes = [2, 128], strides = [1, 1]} : vector<2x512xf32> to vector<2x128xf32>
    %26 = vector.extract_strided_slice %12 {offsets = [0, 384], sizes = [2, 128], strides = [1, 1]} : vector<2x512xf32> to vector<2x128xf32>
    %27 = arith.mulf %18, %26 : vector<2x128xf32>
    %28 = arith.addf %25, %27 : vector<2x128xf32>
    %29 = math.tanh %28 : vector<2x128xf32>
    %cst_12 = arith.constant 1.000000e+00 : f32
    %30 = vector.broadcast %cst_12 : f32 to vector<2x128xf32>
    %31 = arith.subf %30, %24 : vector<2x128xf32>
    %32 = arith.mulf %31, %29 : vector<2x128xf32>
    %33 = arith.mulf %24, %4 : vector<2x128xf32>
    %34 = arith.addf %32, %33 : vector<2x128xf32>
    %35 = arith.addf %34, %4 : vector<2x128xf32>
    %36 = arith.truncf %35 : vector<2x128xf32> to vector<2x128xbf16>
    %cst_13 = arith.constant dense<0.000000e+00> : vector<2x512xf32>
    %37 = tpu.matmul %36, %2, %cst_13 {dimension_numbers = #tpu.dot_dimension_numbers<[1], [0], [0], [1], [0, 0, 1, 1], [], []>} : vector<2x128xbf16>, vector<128x512xbf16>, vector<2x512xf32> -> vector<2x512xf32>
    %38 = vector.broadcast %3 : vector<1x512xf32> to vector<2x512xf32>
    %39 = arith.addf %37, %38 : vector<2x512xf32>
    %40 = vector.extract_strided_slice %39 {offsets = [0, 0], sizes = [2, 128], strides = [1, 1]} : vector<2x512xf32> to vector<2x128xf32>
    %41 = arith.negf %40 : vector<2x128xf32>
    %42 = math.exp %41 : vector<2x128xf32>
    %cst_14 = arith.constant 1.000000e+00 : f32
    %43 = vector.broadcast %cst_14 : f32 to vector<2x128xf32>
    %44 = arith.addf %43, %42 : vector<2x128xf32>
    %45 = arith.divf %43, %44 : vector<2x128xf32>
    %46 = vector.extract_strided_slice %39 {offsets = [0, 128], sizes = [2, 128], strides = [1, 1]} : vector<2x512xf32> to vector<2x128xf32>
    %47 = arith.negf %46 : vector<2x128xf32>
    %48 = math.exp %47 : vector<2x128xf32>
    %cst_15 = arith.constant 1.000000e+00 : f32
    %49 = vector.broadcast %cst_15 : f32 to vector<2x128xf32>
    %50 = arith.addf %49, %48 : vector<2x128xf32>
    %51 = arith.divf %49, %50 : vector<2x128xf32>
    %52 = vector.extract_strided_slice %39 {offsets = [0, 256], sizes = [2, 128], strides = [1, 1]} : vector<2x512xf32> to vector<2x128xf32>
    %53 = vector.extract_strided_slice %39 {offsets = [0, 384], sizes = [2, 128], strides = [1, 1]} : vector<2x512xf32> to vector<2x128xf32>
    %54 = arith.mulf %45, %53 : vector<2x128xf32>
    %55 = arith.addf %52, %54 : vector<2x128xf32>
    %56 = math.tanh %55 : vector<2x128xf32>
    %cst_16 = arith.constant 1.000000e+00 : f32
    %57 = vector.broadcast %cst_16 : f32 to vector<2x128xf32>
    %58 = arith.subf %57, %51 : vector<2x128xf32>
    %59 = arith.mulf %58, %56 : vector<2x128xf32>
    %60 = arith.mulf %51, %4 : vector<2x128xf32>
    %61 = arith.addf %59, %60 : vector<2x128xf32>
    %c1_i32 = arith.constant 1 : i32
    %62 = arith.index_cast %c1_i32 : i32 to index
    %c0_17 = arith.constant 0 : index
    %c0_18 = arith.constant 0 : index
    %63 = vector.load %arg0[%62, %c0_17, %c0_18] : memref<8x2x128xf32, #tpu.memory_space<vmem>>, vector<1x2x128xf32>
    %64 = vector.shape_cast %63 : vector<1x2x128xf32> to vector<2x128xf32>
    %65 = arith.addf %64, %34 : vector<2x128xf32>
    %66 = arith.truncf %65 : vector<2x128xf32> to vector<2x128xbf16>
    %cst_19 = arith.constant dense<0.000000e+00> : vector<2x512xf32>
    %67 = tpu.matmul %66, %0, %cst_19 {dimension_numbers = #tpu.dot_dimension_numbers<[1], [0], [0], [1], [0, 0, 1, 1], [], []>} : vector<2x128xbf16>, vector<128x512xbf16>, vector<2x512xf32> -> vector<2x512xf32>
    %68 = vector.broadcast %1 : vector<1x512xf32> to vector<2x512xf32>
    %69 = arith.addf %67, %68 : vector<2x512xf32>
    %70 = vector.extract_strided_slice %69 {offsets = [0, 0], sizes = [2, 128], strides = [1, 1]} : vector<2x512xf32> to vector<2x128xf32>
    %71 = arith.negf %70 : vector<2x128xf32>
    %72 = math.exp %71 : vector<2x128xf32>
    %cst_20 = arith.constant 1.000000e+00 : f32
    %73 = vector.broadcast %cst_20 : f32 to vector<2x128xf32>
    %74 = arith.addf %73, %72 : vector<2x128xf32>
    %75 = arith.divf %73, %74 : vector<2x128xf32>
    %76 = vector.extract_strided_slice %69 {offsets = [0, 128], sizes = [2, 128], strides = [1, 1]} : vector<2x512xf32> to vector<2x128xf32>
    %77 = arith.negf %76 : vector<2x128xf32>
    %78 = math.exp %77 : vector<2x128xf32>
    %cst_21 = arith.constant 1.000000e+00 : f32
    %79 = vector.broadcast %cst_21 : f32 to vector<2x128xf32>
    %80 = arith.addf %79, %78 : vector<2x128xf32>
    %81 = arith.divf %79, %80 : vector<2x128xf32>
    %82 = vector.extract_strided_slice %69 {offsets = [0, 256], sizes = [2, 128], strides = [1, 1]} : vector<2x512xf32> to vector<2x128xf32>
    %83 = vector.extract_strided_slice %69 {offsets = [0, 384], sizes = [2, 128], strides = [1, 1]} : vector<2x512xf32> to vector<2x128xf32>
    %84 = arith.mulf %75, %83 : vector<2x128xf32>
    %85 = arith.addf %82, %84 : vector<2x128xf32>
    %86 = math.tanh %85 : vector<2x128xf32>
    %cst_22 = arith.constant 1.000000e+00 : f32
    %87 = vector.broadcast %cst_22 : f32 to vector<2x128xf32>
    %88 = arith.subf %87, %81 : vector<2x128xf32>
    %89 = arith.mulf %88, %86 : vector<2x128xf32>
    %90 = arith.mulf %81, %34 : vector<2x128xf32>
    %91 = arith.addf %89, %90 : vector<2x128xf32>
    %92 = arith.addf %91, %61 : vector<2x128xf32>
    %93 = arith.truncf %92 : vector<2x128xf32> to vector<2x128xbf16>
    %cst_23 = arith.constant dense<0.000000e+00> : vector<2x512xf32>
    %94 = tpu.matmul %93, %2, %cst_23 {dimension_numbers = #tpu.dot_dimension_numbers<[1], [0], [0], [1], [0, 0, 1, 1], [], []>} : vector<2x128xbf16>, vector<128x512xbf16>, vector<2x512xf32> -> vector<2x512xf32>
    %95 = vector.broadcast %3 : vector<1x512xf32> to vector<2x512xf32>
    %96 = arith.addf %94, %95 : vector<2x512xf32>
    %97 = vector.extract_strided_slice %96 {offsets = [0, 0], sizes = [2, 128], strides = [1, 1]} : vector<2x512xf32> to vector<2x128xf32>
    %98 = arith.negf %97 : vector<2x128xf32>
    %99 = math.exp %98 : vector<2x128xf32>
    %cst_24 = arith.constant 1.000000e+00 : f32
    %100 = vector.broadcast %cst_24 : f32 to vector<2x128xf32>
    %101 = arith.addf %100, %99 : vector<2x128xf32>
    %102 = arith.divf %100, %101 : vector<2x128xf32>
    %103 = vector.extract_strided_slice %96 {offsets = [0, 128], sizes = [2, 128], strides = [1, 1]} : vector<2x512xf32> to vector<2x128xf32>
    %104 = arith.negf %103 : vector<2x128xf32>
    %105 = math.exp %104 : vector<2x128xf32>
    %cst_25 = arith.constant 1.000000e+00 : f32
    %106 = vector.broadcast %cst_25 : f32 to vector<2x128xf32>
    %107 = arith.addf %106, %105 : vector<2x128xf32>
    %108 = arith.divf %106, %107 : vector<2x128xf32>
    %109 = vector.extract_strided_slice %96 {offsets = [0, 256], sizes = [2, 128], strides = [1, 1]} : vector<2x512xf32> to vector<2x128xf32>
    %110 = vector.extract_strided_slice %96 {offsets = [0, 384], sizes = [2, 128], strides = [1, 1]} : vector<2x512xf32> to vector<2x128xf32>
    %111 = arith.mulf %102, %110 : vector<2x128xf32>
    %112 = arith.addf %109, %111 : vector<2x128xf32>
    %113 = math.tanh %112 : vector<2x128xf32>
    %cst_26 = arith.constant 1.000000e+00 : f32
    %114 = vector.broadcast %cst_26 : f32 to vector<2x128xf32>
    %115 = arith.subf %114, %108 : vector<2x128xf32>
    %116 = arith.mulf %115, %113 : vector<2x128xf32>
    %117 = arith.mulf %108, %61 : vector<2x128xf32>
    %118 = arith.addf %116, %117 : vector<2x128xf32>
    %c2_i32 = arith.constant 2 : i32
    %119 = arith.index_cast %c2_i32 : i32 to index
    %c0_27 = arith.constant 0 : index
    %c0_28 = arith.constant 0 : index
    %120 = vector.load %arg0[%119, %c0_27, %c0_28] : memref<8x2x128xf32, #tpu.memory_space<vmem>>, vector<1x2x128xf32>
    %121 = vector.shape_cast %120 : vector<1x2x128xf32> to vector<2x128xf32>
    %122 = arith.addf %121, %91 : vector<2x128xf32>
    %123 = arith.truncf %122 : vector<2x128xf32> to vector<2x128xbf16>
    %cst_29 = arith.constant dense<0.000000e+00> : vector<2x512xf32>
    %124 = tpu.matmul %123, %0, %cst_29 {dimension_numbers = #tpu.dot_dimension_numbers<[1], [0], [0], [1], [0, 0, 1, 1], [], []>} : vector<2x128xbf16>, vector<128x512xbf16>, vector<2x512xf32> -> vector<2x512xf32>
    %125 = vector.broadcast %1 : vector<1x512xf32> to vector<2x512xf32>
    %126 = arith.addf %124, %125 : vector<2x512xf32>
    %127 = vector.extract_strided_slice %126 {offsets = [0, 0], sizes = [2, 128], strides = [1, 1]} : vector<2x512xf32> to vector<2x128xf32>
    %128 = arith.negf %127 : vector<2x128xf32>
    %129 = math.exp %128 : vector<2x128xf32>
    %cst_30 = arith.constant 1.000000e+00 : f32
    %130 = vector.broadcast %cst_30 : f32 to vector<2x128xf32>
    %131 = arith.addf %130, %129 : vector<2x128xf32>
    %132 = arith.divf %130, %131 : vector<2x128xf32>
    %133 = vector.extract_strided_slice %126 {offsets = [0, 128], sizes = [2, 128], strides = [1, 1]} : vector<2x512xf32> to vector<2x128xf32>
    %134 = arith.negf %133 : vector<2x128xf32>
    %135 = math.exp %134 : vector<2x128xf32>
    %cst_31 = arith.constant 1.000000e+00 : f32
    %136 = vector.broadcast %cst_31 : f32 to vector<2x128xf32>
    %137 = arith.addf %136, %135 : vector<2x128xf32>
    %138 = arith.divf %136, %137 : vector<2x128xf32>
    %139 = vector.extract_strided_slice %126 {offsets = [0, 256], sizes = [2, 128], strides = [1, 1]} : vector<2x512xf32> to vector<2x128xf32>
    %140 = vector.extract_strided_slice %126 {offsets = [0, 384], sizes = [2, 128], strides = [1, 1]} : vector<2x512xf32> to vector<2x128xf32>
    %141 = arith.mulf %132, %140 : vector<2x128xf32>
    %142 = arith.addf %139, %141 : vector<2x128xf32>
    %143 = math.tanh %142 : vector<2x128xf32>
    %cst_32 = arith.constant 1.000000e+00 : f32
    %144 = vector.broadcast %cst_32 : f32 to vector<2x128xf32>
    %145 = arith.subf %144, %138 : vector<2x128xf32>
    %146 = arith.mulf %145, %143 : vector<2x128xf32>
    %147 = arith.mulf %138, %91 : vector<2x128xf32>
    %148 = arith.addf %146, %147 : vector<2x128xf32>
    %149 = arith.addf %148, %118 : vector<2x128xf32>
    %150 = arith.truncf %149 : vector<2x128xf32> to vector<2x128xbf16>
    %cst_33 = arith.constant dense<0.000000e+00> : vector<2x512xf32>
    %151 = tpu.matmul %150, %2, %cst_33 {dimension_numbers = #tpu.dot_dimension_numbers<[1], [0], [0], [1], [0, 0, 1, 1], [], []>} : vector<2x128xbf16>, vector<128x512xbf16>, vector<2x512xf32> -> vector<2x512xf32>
    %152 = vector.broadcast %3 : vector<1x512xf32> to vector<2x512xf32>
    %153 = arith.addf %151, %152 : vector<2x512xf32>
    %154 = vector.extract_strided_slice %153 {offsets = [0, 0], sizes = [2, 128], strides = [1, 1]} : vector<2x512xf32> to vector<2x128xf32>
    %155 = arith.negf %154 : vector<2x128xf32>
    %156 = math.exp %155 : vector<2x128xf32>
    %cst_34 = arith.constant 1.000000e+00 : f32
    %157 = vector.broadcast %cst_34 : f32 to vector<2x128xf32>
    %158 = arith.addf %157, %156 : vector<2x128xf32>
    %159 = arith.divf %157, %158 : vector<2x128xf32>
    %160 = vector.extract_strided_slice %153 {offsets = [0, 128], sizes = [2, 128], strides = [1, 1]} : vector<2x512xf32> to vector<2x128xf32>
    %161 = arith.negf %160 : vector<2x128xf32>
    %162 = math.exp %161 : vector<2x128xf32>
    %cst_35 = arith.constant 1.000000e+00 : f32
    %163 = vector.broadcast %cst_35 : f32 to vector<2x128xf32>
    %164 = arith.addf %163, %162 : vector<2x128xf32>
    %165 = arith.divf %163, %164 : vector<2x128xf32>
    %166 = vector.extract_strided_slice %153 {offsets = [0, 256], sizes = [2, 128], strides = [1, 1]} : vector<2x512xf32> to vector<2x128xf32>
    %167 = vector.extract_strided_slice %153 {offsets = [0, 384], sizes = [2, 128], strides = [1, 1]} : vector<2x512xf32> to vector<2x128xf32>
    %168 = arith.mulf %159, %167 : vector<2x128xf32>
    %169 = arith.addf %166, %168 : vector<2x128xf32>
    %170 = math.tanh %169 : vector<2x128xf32>
    %cst_36 = arith.constant 1.000000e+00 : f32
    %171 = vector.broadcast %cst_36 : f32 to vector<2x128xf32>
    %172 = arith.subf %171, %165 : vector<2x128xf32>
    %173 = arith.mulf %172, %170 : vector<2x128xf32>
    %174 = arith.mulf %165, %118 : vector<2x128xf32>
    %175 = arith.addf %173, %174 : vector<2x128xf32>
    %c3_i32 = arith.constant 3 : i32
    %176 = arith.index_cast %c3_i32 : i32 to index
    %c0_37 = arith.constant 0 : index
    %c0_38 = arith.constant 0 : index
    %177 = vector.load %arg0[%176, %c0_37, %c0_38] : memref<8x2x128xf32, #tpu.memory_space<vmem>>, vector<1x2x128xf32>
    %178 = vector.shape_cast %177 : vector<1x2x128xf32> to vector<2x128xf32>
    %179 = arith.addf %178, %148 : vector<2x128xf32>
    %180 = arith.truncf %179 : vector<2x128xf32> to vector<2x128xbf16>
    %cst_39 = arith.constant dense<0.000000e+00> : vector<2x512xf32>
    %181 = tpu.matmul %180, %0, %cst_39 {dimension_numbers = #tpu.dot_dimension_numbers<[1], [0], [0], [1], [0, 0, 1, 1], [], []>} : vector<2x128xbf16>, vector<128x512xbf16>, vector<2x512xf32> -> vector<2x512xf32>
    %182 = vector.broadcast %1 : vector<1x512xf32> to vector<2x512xf32>
    %183 = arith.addf %181, %182 : vector<2x512xf32>
    %184 = vector.extract_strided_slice %183 {offsets = [0, 0], sizes = [2, 128], strides = [1, 1]} : vector<2x512xf32> to vector<2x128xf32>
    %185 = arith.negf %184 : vector<2x128xf32>
    %186 = math.exp %185 : vector<2x128xf32>
    %cst_40 = arith.constant 1.000000e+00 : f32
    %187 = vector.broadcast %cst_40 : f32 to vector<2x128xf32>
    %188 = arith.addf %187, %186 : vector<2x128xf32>
    %189 = arith.divf %187, %188 : vector<2x128xf32>
    %190 = vector.extract_strided_slice %183 {offsets = [0, 128], sizes = [2, 128], strides = [1, 1]} : vector<2x512xf32> to vector<2x128xf32>
    %191 = arith.negf %190 : vector<2x128xf32>
    %192 = math.exp %191 : vector<2x128xf32>
    %cst_41 = arith.constant 1.000000e+00 : f32
    %193 = vector.broadcast %cst_41 : f32 to vector<2x128xf32>
    %194 = arith.addf %193, %192 : vector<2x128xf32>
    %195 = arith.divf %193, %194 : vector<2x128xf32>
    %196 = vector.extract_strided_slice %183 {offsets = [0, 256], sizes = [2, 128], strides = [1, 1]} : vector<2x512xf32> to vector<2x128xf32>
    %197 = vector.extract_strided_slice %183 {offsets = [0, 384], sizes = [2, 128], strides = [1, 1]} : vector<2x512xf32> to vector<2x128xf32>
    %198 = arith.mulf %189, %197 : vector<2x128xf32>
    %199 = arith.addf %196, %198 : vector<2x128xf32>
    %200 = math.tanh %199 : vector<2x128xf32>
    %cst_42 = arith.constant 1.000000e+00 : f32
    %201 = vector.broadcast %cst_42 : f32 to vector<2x128xf32>
    %202 = arith.subf %201, %195 : vector<2x128xf32>
    %203 = arith.mulf %202, %200 : vector<2x128xf32>
    %204 = arith.mulf %195, %148 : vector<2x128xf32>
    %205 = arith.addf %203, %204 : vector<2x128xf32>
    %206 = arith.addf %205, %175 : vector<2x128xf32>
    %207 = arith.truncf %206 : vector<2x128xf32> to vector<2x128xbf16>
    %cst_43 = arith.constant dense<0.000000e+00> : vector<2x512xf32>
    %208 = tpu.matmul %207, %2, %cst_43 {dimension_numbers = #tpu.dot_dimension_numbers<[1], [0], [0], [1], [0, 0, 1, 1], [], []>} : vector<2x128xbf16>, vector<128x512xbf16>, vector<2x512xf32> -> vector<2x512xf32>
    %209 = vector.broadcast %3 : vector<1x512xf32> to vector<2x512xf32>
    %210 = arith.addf %208, %209 : vector<2x512xf32>
    %211 = vector.extract_strided_slice %210 {offsets = [0, 0], sizes = [2, 128], strides = [1, 1]} : vector<2x512xf32> to vector<2x128xf32>
    %212 = arith.negf %211 : vector<2x128xf32>
    %213 = math.exp %212 : vector<2x128xf32>
    %cst_44 = arith.constant 1.000000e+00 : f32
    %214 = vector.broadcast %cst_44 : f32 to vector<2x128xf32>
    %215 = arith.addf %214, %213 : vector<2x128xf32>
    %216 = arith.divf %214, %215 : vector<2x128xf32>
    %217 = vector.extract_strided_slice %210 {offsets = [0, 128], sizes = [2, 128], strides = [1, 1]} : vector<2x512xf32> to vector<2x128xf32>
    %218 = arith.negf %217 : vector<2x128xf32>
    %219 = math.exp %218 : vector<2x128xf32>
    %cst_45 = arith.constant 1.000000e+00 : f32
    %220 = vector.broadcast %cst_45 : f32 to vector<2x128xf32>
    %221 = arith.addf %220, %219 : vector<2x128xf32>
    %222 = arith.divf %220, %221 : vector<2x128xf32>
    %223 = vector.extract_strided_slice %210 {offsets = [0, 256], sizes = [2, 128], strides = [1, 1]} : vector<2x512xf32> to vector<2x128xf32>
    %224 = vector.extract_strided_slice %210 {offsets = [0, 384], sizes = [2, 128], strides = [1, 1]} : vector<2x512xf32> to vector<2x128xf32>
    %225 = arith.mulf %216, %224 : vector<2x128xf32>
    %226 = arith.addf %223, %225 : vector<2x128xf32>
    %227 = math.tanh %226 : vector<2x128xf32>
    %cst_46 = arith.constant 1.000000e+00 : f32
    %228 = vector.broadcast %cst_46 : f32 to vector<2x128xf32>
    %229 = arith.subf %228, %222 : vector<2x128xf32>
    %230 = arith.mulf %229, %227 : vector<2x128xf32>
    %231 = arith.mulf %222, %175 : vector<2x128xf32>
    %232 = arith.addf %230, %231 : vector<2x128xf32>
    %c4_i32 = arith.constant 4 : i32
    %233 = arith.index_cast %c4_i32 : i32 to index
    %c0_47 = arith.constant 0 : index
    %c0_48 = arith.constant 0 : index
    %234 = vector.load %arg0[%233, %c0_47, %c0_48] : memref<8x2x128xf32, #tpu.memory_space<vmem>>, vector<1x2x128xf32>
    %235 = vector.shape_cast %234 : vector<1x2x128xf32> to vector<2x128xf32>
    %236 = arith.addf %235, %205 : vector<2x128xf32>
    %237 = arith.truncf %236 : vector<2x128xf32> to vector<2x128xbf16>
    %cst_49 = arith.constant dense<0.000000e+00> : vector<2x512xf32>
    %238 = tpu.matmul %237, %0, %cst_49 {dimension_numbers = #tpu.dot_dimension_numbers<[1], [0], [0], [1], [0, 0, 1, 1], [], []>} : vector<2x128xbf16>, vector<128x512xbf16>, vector<2x512xf32> -> vector<2x512xf32>
    %239 = vector.broadcast %1 : vector<1x512xf32> to vector<2x512xf32>
    %240 = arith.addf %238, %239 : vector<2x512xf32>
    %241 = vector.extract_strided_slice %240 {offsets = [0, 0], sizes = [2, 128], strides = [1, 1]} : vector<2x512xf32> to vector<2x128xf32>
    %242 = arith.negf %241 : vector<2x128xf32>
    %243 = math.exp %242 : vector<2x128xf32>
    %cst_50 = arith.constant 1.000000e+00 : f32
    %244 = vector.broadcast %cst_50 : f32 to vector<2x128xf32>
    %245 = arith.addf %244, %243 : vector<2x128xf32>
    %246 = arith.divf %244, %245 : vector<2x128xf32>
    %247 = vector.extract_strided_slice %240 {offsets = [0, 128], sizes = [2, 128], strides = [1, 1]} : vector<2x512xf32> to vector<2x128xf32>
    %248 = arith.negf %247 : vector<2x128xf32>
    %249 = math.exp %248 : vector<2x128xf32>
    %cst_51 = arith.constant 1.000000e+00 : f32
    %250 = vector.broadcast %cst_51 : f32 to vector<2x128xf32>
    %251 = arith.addf %250, %249 : vector<2x128xf32>
    %252 = arith.divf %250, %251 : vector<2x128xf32>
    %253 = vector.extract_strided_slice %240 {offsets = [0, 256], sizes = [2, 128], strides = [1, 1]} : vector<2x512xf32> to vector<2x128xf32>
    %254 = vector.extract_strided_slice %240 {offsets = [0, 384], sizes = [2, 128], strides = [1, 1]} : vector<2x512xf32> to vector<2x128xf32>
    %255 = arith.mulf %246, %254 : vector<2x128xf32>
    %256 = arith.addf %253, %255 : vector<2x128xf32>
    %257 = math.tanh %256 : vector<2x128xf32>
    %cst_52 = arith.constant 1.000000e+00 : f32
    %258 = vector.broadcast %cst_52 : f32 to vector<2x128xf32>
    %259 = arith.subf %258, %252 : vector<2x128xf32>
    %260 = arith.mulf %259, %257 : vector<2x128xf32>
    %261 = arith.mulf %252, %205 : vector<2x128xf32>
    %262 = arith.addf %260, %261 : vector<2x128xf32>
    %263 = arith.addf %262, %232 : vector<2x128xf32>
    %264 = arith.truncf %263 : vector<2x128xf32> to vector<2x128xbf16>
    %cst_53 = arith.constant dense<0.000000e+00> : vector<2x512xf32>
    %265 = tpu.matmul %264, %2, %cst_53 {dimension_numbers = #tpu.dot_dimension_numbers<[1], [0], [0], [1], [0, 0, 1, 1], [], []>} : vector<2x128xbf16>, vector<128x512xbf16>, vector<2x512xf32> -> vector<2x512xf32>
    %266 = vector.broadcast %3 : vector<1x512xf32> to vector<2x512xf32>
    %267 = arith.addf %265, %266 : vector<2x512xf32>
    %268 = vector.extract_strided_slice %267 {offsets = [0, 0], sizes = [2, 128], strides = [1, 1]} : vector<2x512xf32> to vector<2x128xf32>
    %269 = arith.negf %268 : vector<2x128xf32>
    %270 = math.exp %269 : vector<2x128xf32>
    %cst_54 = arith.constant 1.000000e+00 : f32
    %271 = vector.broadcast %cst_54 : f32 to vector<2x128xf32>
    %272 = arith.addf %271, %270 : vector<2x128xf32>
    %273 = arith.divf %271, %272 : vector<2x128xf32>
    %274 = vector.extract_strided_slice %267 {offsets = [0, 128], sizes = [2, 128], strides = [1, 1]} : vector<2x512xf32> to vector<2x128xf32>
    %275 = arith.negf %274 : vector<2x128xf32>
    %276 = math.exp %275 : vector<2x128xf32>
    %cst_55 = arith.constant 1.000000e+00 : f32
    %277 = vector.broadcast %cst_55 : f32 to vector<2x128xf32>
    %278 = arith.addf %277, %276 : vector<2x128xf32>
    %279 = arith.divf %277, %278 : vector<2x128xf32>
    %280 = vector.extract_strided_slice %267 {offsets = [0, 256], sizes = [2, 128], strides = [1, 1]} : vector<2x512xf32> to vector<2x128xf32>
    %281 = vector.extract_strided_slice %267 {offsets = [0, 384], sizes = [2, 128], strides = [1, 1]} : vector<2x512xf32> to vector<2x128xf32>
    %282 = arith.mulf %273, %281 : vector<2x128xf32>
    %283 = arith.addf %280, %282 : vector<2x128xf32>
    %284 = math.tanh %283 : vector<2x128xf32>
    %cst_56 = arith.constant 1.000000e+00 : f32
    %285 = vector.broadcast %cst_56 : f32 to vector<2x128xf32>
    %286 = arith.subf %285, %279 : vector<2x128xf32>
    %287 = arith.mulf %286, %284 : vector<2x128xf32>
    %288 = arith.mulf %279, %232 : vector<2x128xf32>
    %289 = arith.addf %287, %288 : vector<2x128xf32>
    %c5_i32 = arith.constant 5 : i32
    %290 = arith.index_cast %c5_i32 : i32 to index
    %c0_57 = arith.constant 0 : index
    %c0_58 = arith.constant 0 : index
    %291 = vector.load %arg0[%290, %c0_57, %c0_58] : memref<8x2x128xf32, #tpu.memory_space<vmem>>, vector<1x2x128xf32>
    %292 = vector.shape_cast %291 : vector<1x2x128xf32> to vector<2x128xf32>
    %293 = arith.addf %292, %262 : vector<2x128xf32>
    %294 = arith.truncf %293 : vector<2x128xf32> to vector<2x128xbf16>
    %cst_59 = arith.constant dense<0.000000e+00> : vector<2x512xf32>
    %295 = tpu.matmul %294, %0, %cst_59 {dimension_numbers = #tpu.dot_dimension_numbers<[1], [0], [0], [1], [0, 0, 1, 1], [], []>} : vector<2x128xbf16>, vector<128x512xbf16>, vector<2x512xf32> -> vector<2x512xf32>
    %296 = vector.broadcast %1 : vector<1x512xf32> to vector<2x512xf32>
    %297 = arith.addf %295, %296 : vector<2x512xf32>
    %298 = vector.extract_strided_slice %297 {offsets = [0, 0], sizes = [2, 128], strides = [1, 1]} : vector<2x512xf32> to vector<2x128xf32>
    %299 = arith.negf %298 : vector<2x128xf32>
    %300 = math.exp %299 : vector<2x128xf32>
    %cst_60 = arith.constant 1.000000e+00 : f32
    %301 = vector.broadcast %cst_60 : f32 to vector<2x128xf32>
    %302 = arith.addf %301, %300 : vector<2x128xf32>
    %303 = arith.divf %301, %302 : vector<2x128xf32>
    %304 = vector.extract_strided_slice %297 {offsets = [0, 128], sizes = [2, 128], strides = [1, 1]} : vector<2x512xf32> to vector<2x128xf32>
    %305 = arith.negf %304 : vector<2x128xf32>
    %306 = math.exp %305 : vector<2x128xf32>
    %cst_61 = arith.constant 1.000000e+00 : f32
    %307 = vector.broadcast %cst_61 : f32 to vector<2x128xf32>
    %308 = arith.addf %307, %306 : vector<2x128xf32>
    %309 = arith.divf %307, %308 : vector<2x128xf32>
    %310 = vector.extract_strided_slice %297 {offsets = [0, 256], sizes = [2, 128], strides = [1, 1]} : vector<2x512xf32> to vector<2x128xf32>
    %311 = vector.extract_strided_slice %297 {offsets = [0, 384], sizes = [2, 128], strides = [1, 1]} : vector<2x512xf32> to vector<2x128xf32>
    %312 = arith.mulf %303, %311 : vector<2x128xf32>
    %313 = arith.addf %310, %312 : vector<2x128xf32>
    %314 = math.tanh %313 : vector<2x128xf32>
    %cst_62 = arith.constant 1.000000e+00 : f32
    %315 = vector.broadcast %cst_62 : f32 to vector<2x128xf32>
    %316 = arith.subf %315, %309 : vector<2x128xf32>
    %317 = arith.mulf %316, %314 : vector<2x128xf32>
    %318 = arith.mulf %309, %262 : vector<2x128xf32>
    %319 = arith.addf %317, %318 : vector<2x128xf32>
    %320 = arith.addf %319, %289 : vector<2x128xf32>
    %321 = arith.truncf %320 : vector<2x128xf32> to vector<2x128xbf16>
    %cst_63 = arith.constant dense<0.000000e+00> : vector<2x512xf32>
    %322 = tpu.matmul %321, %2, %cst_63 {dimension_numbers = #tpu.dot_dimension_numbers<[1], [0], [0], [1], [0, 0, 1, 1], [], []>} : vector<2x128xbf16>, vector<128x512xbf16>, vector<2x512xf32> -> vector<2x512xf32>
    %323 = vector.broadcast %3 : vector<1x512xf32> to vector<2x512xf32>
    %324 = arith.addf %322, %323 : vector<2x512xf32>
    %325 = vector.extract_strided_slice %324 {offsets = [0, 0], sizes = [2, 128], strides = [1, 1]} : vector<2x512xf32> to vector<2x128xf32>
    %326 = arith.negf %325 : vector<2x128xf32>
    %327 = math.exp %326 : vector<2x128xf32>
    %cst_64 = arith.constant 1.000000e+00 : f32
    %328 = vector.broadcast %cst_64 : f32 to vector<2x128xf32>
    %329 = arith.addf %328, %327 : vector<2x128xf32>
    %330 = arith.divf %328, %329 : vector<2x128xf32>
    %331 = vector.extract_strided_slice %324 {offsets = [0, 128], sizes = [2, 128], strides = [1, 1]} : vector<2x512xf32> to vector<2x128xf32>
    %332 = arith.negf %331 : vector<2x128xf32>
    %333 = math.exp %332 : vector<2x128xf32>
    %cst_65 = arith.constant 1.000000e+00 : f32
    %334 = vector.broadcast %cst_65 : f32 to vector<2x128xf32>
    %335 = arith.addf %334, %333 : vector<2x128xf32>
    %336 = arith.divf %334, %335 : vector<2x128xf32>
    %337 = vector.extract_strided_slice %324 {offsets = [0, 256], sizes = [2, 128], strides = [1, 1]} : vector<2x512xf32> to vector<2x128xf32>
    %338 = vector.extract_strided_slice %324 {offsets = [0, 384], sizes = [2, 128], strides = [1, 1]} : vector<2x512xf32> to vector<2x128xf32>
    %339 = arith.mulf %330, %338 : vector<2x128xf32>
    %340 = arith.addf %337, %339 : vector<2x128xf32>
    %341 = math.tanh %340 : vector<2x128xf32>
    %cst_66 = arith.constant 1.000000e+00 : f32
    %342 = vector.broadcast %cst_66 : f32 to vector<2x128xf32>
    %343 = arith.subf %342, %336 : vector<2x128xf32>
    %344 = arith.mulf %343, %341 : vector<2x128xf32>
    %345 = arith.mulf %336, %289 : vector<2x128xf32>
    %346 = arith.addf %344, %345 : vector<2x128xf32>
    %c6_i32 = arith.constant 6 : i32
    %347 = arith.index_cast %c6_i32 : i32 to index
    %c0_67 = arith.constant 0 : index
    %c0_68 = arith.constant 0 : index
    %348 = vector.load %arg0[%347, %c0_67, %c0_68] : memref<8x2x128xf32, #tpu.memory_space<vmem>>, vector<1x2x128xf32>
    %349 = vector.shape_cast %348 : vector<1x2x128xf32> to vector<2x128xf32>
    %350 = arith.addf %349, %319 : vector<2x128xf32>
    %351 = arith.truncf %350 : vector<2x128xf32> to vector<2x128xbf16>
    %cst_69 = arith.constant dense<0.000000e+00> : vector<2x512xf32>
    %352 = tpu.matmul %351, %0, %cst_69 {dimension_numbers = #tpu.dot_dimension_numbers<[1], [0], [0], [1], [0, 0, 1, 1], [], []>} : vector<2x128xbf16>, vector<128x512xbf16>, vector<2x512xf32> -> vector<2x512xf32>
    %353 = vector.broadcast %1 : vector<1x512xf32> to vector<2x512xf32>
    %354 = arith.addf %352, %353 : vector<2x512xf32>
    %355 = vector.extract_strided_slice %354 {offsets = [0, 0], sizes = [2, 128], strides = [1, 1]} : vector<2x512xf32> to vector<2x128xf32>
    %356 = arith.negf %355 : vector<2x128xf32>
    %357 = math.exp %356 : vector<2x128xf32>
    %cst_70 = arith.constant 1.000000e+00 : f32
    %358 = vector.broadcast %cst_70 : f32 to vector<2x128xf32>
    %359 = arith.addf %358, %357 : vector<2x128xf32>
    %360 = arith.divf %358, %359 : vector<2x128xf32>
    %361 = vector.extract_strided_slice %354 {offsets = [0, 128], sizes = [2, 128], strides = [1, 1]} : vector<2x512xf32> to vector<2x128xf32>
    %362 = arith.negf %361 : vector<2x128xf32>
    %363 = math.exp %362 : vector<2x128xf32>
    %cst_71 = arith.constant 1.000000e+00 : f32
    %364 = vector.broadcast %cst_71 : f32 to vector<2x128xf32>
    %365 = arith.addf %364, %363 : vector<2x128xf32>
    %366 = arith.divf %364, %365 : vector<2x128xf32>
    %367 = vector.extract_strided_slice %354 {offsets = [0, 256], sizes = [2, 128], strides = [1, 1]} : vector<2x512xf32> to vector<2x128xf32>
    %368 = vector.extract_strided_slice %354 {offsets = [0, 384], sizes = [2, 128], strides = [1, 1]} : vector<2x512xf32> to vector<2x128xf32>
    %369 = arith.mulf %360, %368 : vector<2x128xf32>
    %370 = arith.addf %367, %369 : vector<2x128xf32>
    %371 = math.tanh %370 : vector<2x128xf32>
    %cst_72 = arith.constant 1.000000e+00 : f32
    %372 = vector.broadcast %cst_72 : f32 to vector<2x128xf32>
    %373 = arith.subf %372, %366 : vector<2x128xf32>
    %374 = arith.mulf %373, %371 : vector<2x128xf32>
    %375 = arith.mulf %366, %319 : vector<2x128xf32>
    %376 = arith.addf %374, %375 : vector<2x128xf32>
    %377 = arith.addf %376, %346 : vector<2x128xf32>
    %378 = arith.truncf %377 : vector<2x128xf32> to vector<2x128xbf16>
    %cst_73 = arith.constant dense<0.000000e+00> : vector<2x512xf32>
    %379 = tpu.matmul %378, %2, %cst_73 {dimension_numbers = #tpu.dot_dimension_numbers<[1], [0], [0], [1], [0, 0, 1, 1], [], []>} : vector<2x128xbf16>, vector<128x512xbf16>, vector<2x512xf32> -> vector<2x512xf32>
    %380 = vector.broadcast %3 : vector<1x512xf32> to vector<2x512xf32>
    %381 = arith.addf %379, %380 : vector<2x512xf32>
    %382 = vector.extract_strided_slice %381 {offsets = [0, 0], sizes = [2, 128], strides = [1, 1]} : vector<2x512xf32> to vector<2x128xf32>
    %383 = arith.negf %382 : vector<2x128xf32>
    %384 = math.exp %383 : vector<2x128xf32>
    %cst_74 = arith.constant 1.000000e+00 : f32
    %385 = vector.broadcast %cst_74 : f32 to vector<2x128xf32>
    %386 = arith.addf %385, %384 : vector<2x128xf32>
    %387 = arith.divf %385, %386 : vector<2x128xf32>
    %388 = vector.extract_strided_slice %381 {offsets = [0, 128], sizes = [2, 128], strides = [1, 1]} : vector<2x512xf32> to vector<2x128xf32>
    %389 = arith.negf %388 : vector<2x128xf32>
    %390 = math.exp %389 : vector<2x128xf32>
    %cst_75 = arith.constant 1.000000e+00 : f32
    %391 = vector.broadcast %cst_75 : f32 to vector<2x128xf32>
    %392 = arith.addf %391, %390 : vector<2x128xf32>
    %393 = arith.divf %391, %392 : vector<2x128xf32>
    %394 = vector.extract_strided_slice %381 {offsets = [0, 256], sizes = [2, 128], strides = [1, 1]} : vector<2x512xf32> to vector<2x128xf32>
    %395 = vector.extract_strided_slice %381 {offsets = [0, 384], sizes = [2, 128], strides = [1, 1]} : vector<2x512xf32> to vector<2x128xf32>
    %396 = arith.mulf %387, %395 : vector<2x128xf32>
    %397 = arith.addf %394, %396 : vector<2x128xf32>
    %398 = math.tanh %397 : vector<2x128xf32>
    %cst_76 = arith.constant 1.000000e+00 : f32
    %399 = vector.broadcast %cst_76 : f32 to vector<2x128xf32>
    %400 = arith.subf %399, %393 : vector<2x128xf32>
    %401 = arith.mulf %400, %398 : vector<2x128xf32>
    %402 = arith.mulf %393, %346 : vector<2x128xf32>
    %403 = arith.addf %401, %402 : vector<2x128xf32>
    %c7_i32 = arith.constant 7 : i32
    %404 = arith.index_cast %c7_i32 : i32 to index
    %c0_77 = arith.constant 0 : index
    %c0_78 = arith.constant 0 : index
    %405 = vector.load %arg0[%404, %c0_77, %c0_78] : memref<8x2x128xf32, #tpu.memory_space<vmem>>, vector<1x2x128xf32>
    %406 = vector.shape_cast %405 : vector<1x2x128xf32> to vector<2x128xf32>
    %407 = arith.addf %406, %376 : vector<2x128xf32>
    %408 = arith.truncf %407 : vector<2x128xf32> to vector<2x128xbf16>
    %cst_79 = arith.constant dense<0.000000e+00> : vector<2x512xf32>
    %409 = tpu.matmul %408, %0, %cst_79 {dimension_numbers = #tpu.dot_dimension_numbers<[1], [0], [0], [1], [0, 0, 1, 1], [], []>} : vector<2x128xbf16>, vector<128x512xbf16>, vector<2x512xf32> -> vector<2x512xf32>
    %410 = vector.broadcast %1 : vector<1x512xf32> to vector<2x512xf32>
    %411 = arith.addf %409, %410 : vector<2x512xf32>
    %412 = vector.extract_strided_slice %411 {offsets = [0, 0], sizes = [2, 128], strides = [1, 1]} : vector<2x512xf32> to vector<2x128xf32>
    %413 = arith.negf %412 : vector<2x128xf32>
    %414 = math.exp %413 : vector<2x128xf32>
    %cst_80 = arith.constant 1.000000e+00 : f32
    %415 = vector.broadcast %cst_80 : f32 to vector<2x128xf32>
    %416 = arith.addf %415, %414 : vector<2x128xf32>
    %417 = arith.divf %415, %416 : vector<2x128xf32>
    %418 = vector.extract_strided_slice %411 {offsets = [0, 128], sizes = [2, 128], strides = [1, 1]} : vector<2x512xf32> to vector<2x128xf32>
    %419 = arith.negf %418 : vector<2x128xf32>
    %420 = math.exp %419 : vector<2x128xf32>
    %cst_81 = arith.constant 1.000000e+00 : f32
    %421 = vector.broadcast %cst_81 : f32 to vector<2x128xf32>
    %422 = arith.addf %421, %420 : vector<2x128xf32>
    %423 = arith.divf %421, %422 : vector<2x128xf32>
    %424 = vector.extract_strided_slice %411 {offsets = [0, 256], sizes = [2, 128], strides = [1, 1]} : vector<2x512xf32> to vector<2x128xf32>
    %425 = vector.extract_strided_slice %411 {offsets = [0, 384], sizes = [2, 128], strides = [1, 1]} : vector<2x512xf32> to vector<2x128xf32>
    %426 = arith.mulf %417, %425 : vector<2x128xf32>
    %427 = arith.addf %424, %426 : vector<2x128xf32>
    %428 = math.tanh %427 : vector<2x128xf32>
    %cst_82 = arith.constant 1.000000e+00 : f32
    %429 = vector.broadcast %cst_82 : f32 to vector<2x128xf32>
    %430 = arith.subf %429, %423 : vector<2x128xf32>
    %431 = arith.mulf %430, %428 : vector<2x128xf32>
    %432 = arith.mulf %423, %376 : vector<2x128xf32>
    %433 = arith.addf %431, %432 : vector<2x128xf32>
    %434 = arith.addf %433, %403 : vector<2x128xf32>
    %435 = arith.truncf %434 : vector<2x128xf32> to vector<2x128xbf16>
    %cst_83 = arith.constant dense<0.000000e+00> : vector<2x512xf32>
    %436 = tpu.matmul %435, %2, %cst_83 {dimension_numbers = #tpu.dot_dimension_numbers<[1], [0], [0], [1], [0, 0, 1, 1], [], []>} : vector<2x128xbf16>, vector<128x512xbf16>, vector<2x512xf32> -> vector<2x512xf32>
    %437 = vector.broadcast %3 : vector<1x512xf32> to vector<2x512xf32>
    %438 = arith.addf %436, %437 : vector<2x512xf32>
    %439 = vector.extract_strided_slice %438 {offsets = [0, 0], sizes = [2, 128], strides = [1, 1]} : vector<2x512xf32> to vector<2x128xf32>
    %440 = arith.negf %439 : vector<2x128xf32>
    %441 = math.exp %440 : vector<2x128xf32>
    %cst_84 = arith.constant 1.000000e+00 : f32
    %442 = vector.broadcast %cst_84 : f32 to vector<2x128xf32>
    %443 = arith.addf %442, %441 : vector<2x128xf32>
    %444 = arith.divf %442, %443 : vector<2x128xf32>
    %445 = vector.extract_strided_slice %438 {offsets = [0, 128], sizes = [2, 128], strides = [1, 1]} : vector<2x512xf32> to vector<2x128xf32>
    %446 = arith.negf %445 : vector<2x128xf32>
    %447 = math.exp %446 : vector<2x128xf32>
    %cst_85 = arith.constant 1.000000e+00 : f32
    %448 = vector.broadcast %cst_85 : f32 to vector<2x128xf32>
    %449 = arith.addf %448, %447 : vector<2x128xf32>
    %450 = arith.divf %448, %449 : vector<2x128xf32>
    %451 = vector.extract_strided_slice %438 {offsets = [0, 256], sizes = [2, 128], strides = [1, 1]} : vector<2x512xf32> to vector<2x128xf32>
    %452 = vector.extract_strided_slice %438 {offsets = [0, 384], sizes = [2, 128], strides = [1, 1]} : vector<2x512xf32> to vector<2x128xf32>
    %453 = arith.mulf %444, %452 : vector<2x128xf32>
    %454 = arith.addf %451, %453 : vector<2x128xf32>
    %455 = math.tanh %454 : vector<2x128xf32>
    %cst_86 = arith.constant 1.000000e+00 : f32
    %456 = vector.broadcast %cst_86 : f32 to vector<2x128xf32>
    %457 = arith.subf %456, %450 : vector<2x128xf32>
    %458 = arith.mulf %457, %455 : vector<2x128xf32>
    %459 = arith.mulf %450, %403 : vector<2x128xf32>
    %460 = arith.addf %458, %459 : vector<2x128xf32>
    %c8_i32 = arith.constant 8 : i32
    %c0_87 = arith.constant 0 : index
    %c0_88 = arith.constant 0 : index
    %461 = vector.load %arg5[%c0_87, %c0_88] : memref<1x128xf32, #tpu.memory_space<vmem>>, vector<1x128xf32>
    %462 = vector.broadcast %461 : vector<1x128xf32> to vector<2x128xf32>
    %463 = arith.mulf %460, %462 : vector<2x128xf32>
    %cst_89 = arith.constant dense<0.000000e+00> : vector<2xf32>
    %464 = vector.multi_reduction <add>, %463, %cst_89 [1] : vector<2x128xf32> to vector<2xf32>
    %465 = vector.shape_cast %464 : vector<2xf32> to vector<2x1xf32>
    %c0_90 = arith.constant 0 : index
    %c0_91 = arith.constant 0 : index
    %466 = vector.load %arg6[%c0_90, %c0_91] : memref<1x1xf32, #tpu.memory_space<vmem>>, vector<1x1xf32>
    %467 = vector.broadcast %466 : vector<1x1xf32> to vector<2x1xf32>
    %468 = arith.addf %465, %467 : vector<2x1xf32>
    %c0_92 = arith.constant 0 : index
    %c0_93 = arith.constant 0 : index
    %469 = vector.load %arg7[%c0_92, %c0_93] : memref<2x1xf32, #tpu.memory_space<vmem>>, vector<2x1xf32>
    tpu.vector_store %arg7[%c0_92, %c0_93], %468 {strides = array<i32>} : memref<2x1xf32, #tpu.memory_space<vmem>>, vector<2x1xf32>,
    return
  }
}

</mosaic_0001>

<llo_original>
// kernel: tpu_custom_call.1
$region0: #{tpu_custom_call.1}
  #allocation0 [shape = 'u32[]', space=smem, size = 0x4, offset = 0x4, fixed_abs, tag = 'smem constant byte address 0x4 - core index']
  #allocation1 [shape = 'u32[144,128]{1,0:T(1,128)}', space=vmem, size = 0x12000, scoped, tag = 'internal scratch']
  #allocation2 [shape = 'f32[1,1]{1,0:T(1,128)S(1)}', space=vmem, size = 0x200, scoped, tag = 'scoped memory for tpu_custom_call.1']
  %s0 = inlined_call_operand.hbm [shape: f32[8,2,128], index: 0, kind: input, shape index: {}]
  %s1 = inlined_call_operand.hbm [shape: bf16[128,512], index: 1, kind: input, shape index: {}]
  %s2 = inlined_call_operand.vmem [shape: f32[1,512], index: 2, kind: input, shape index: {}]
  %s3 = inlined_call_operand.hbm [shape: bf16[128,512], index: 3, kind: input, shape index: {}]
  %s4 = inlined_call_operand.vmem [shape: f32[1,512], index: 4, kind: input, shape index: {}]
  %s5 = inlined_call_operand.vmem [shape: f32[1,128], index: 5, kind: input, shape index: {}]
  %s6 = inlined_call_operand.<no memory space> [shape: f32[1,1], index: 6, kind: input, shape index: {}]
  %s7 = inlined_call_operand.vmem [shape: f32[2,1], index: 7, kind: output, shape index: {}]
  %s8 = sld [smem:[#allocation0]]
  $region50: #{tpu_custom_call.1} parent=0
    _
  %s10 = ssub.s32 1, %s8
  %s11 = scalar_select 0, %s10, %s8
  %v12 = vstv %s6
  %13 = vst [vmem:[#allocation2] sm:$0x1] %v12
  $region1: #{tpu_custom_call.1} parent=0
    #allocation3 [shape = 'u8[8192]{0}', space=vmem, size = 0x2000, scoped, tag = 'input window, operand 0, single buffered']
    #allocation4 [shape = 's32[1]{0}', space=sflag, size = 0x4, scoped, tag = 'scoped memory for tpu_custom_call.1']
    #allocation5 [shape = 'u8[131072]{0}', space=vmem, size = 0x20000, scoped, tag = 'input window, operand 1, single buffered']
    #allocation6 [shape = 's32[1]{0}', space=sflag, size = 0x4, scoped, tag = 'scoped memory for tpu_custom_call.1']
    #allocation7 [shape = 'u8[131072]{0}', space=vmem, size = 0x20000, scoped, tag = 'input window, operand 3, single buffered']
    %14 = vsyncpa [#allocation4], 0
    %15 = vsyncpa [#allocation6], 0
    // Predicated region
    $region2: #{tpu_custom_call.1} parent=1 // pred_check
      _
    $region3: #{tpu_custom_call.1} parent=1 // pred_check_branch
      %17 = sbr.rel (0) target = $region5
    $region4: #{tpu_custom_call.1} parent=1 // pred_region
      %s19 = ssub.s32 256, 256
      %20 = vsyncadd [#allocation4], %s19
      %s21 = sshll.u32 [#allocation3], 4
      %s22 = int_to_ptr.vmem [resolvable:$true] %s21
      %27 = dma.hbm_to_vmem [thread:$0]  %s0, 256, %s22, [#allocation4], 32, 32, 2
    $region5: #{tpu_custom_call.1} parent=1 // pred_fallthru
      _
    // Predicated region
    $region6: #{tpu_custom_call.1} parent=1 // pred_check
      _
    $region7: #{tpu_custom_call.1} parent=1 // pred_check_branch
      %29 = sbr.rel (0) target = $region9
    $region8: #{tpu_custom_call.1} parent=1 // pred_region
      %s31 = ssub.s32 4096, 4096
      %32 = vsyncadd [#allocation6], %s31
      %s33 = sshll.u32 [#allocation5], 4
      %s34 = int_to_ptr.vmem [resolvable:$true] %s33
      %39 = dma.hbm_to_vmem [thread:$0]  %s1, 4096, %s34, [#allocation6], 256, 256, 16
    $region9: #{tpu_custom_call.1} parent=1 // pred_fallthru
      _
    // Predicated region
    $region10: #{tpu_custom_call.1} parent=1 // pred_check
      _
    $region11: #{tpu_custom_call.1} parent=1 // pred_check_branch
      %41 = sbr.rel (0) target = $region13
    $region12: #{tpu_custom_call.1} parent=1 // pred_region
      _
    $region13: #{tpu_custom_call.1} parent=1 // pred_fallthru
      _
    // Predicated region
    $region14: #{tpu_custom_call.1} parent=1 // pred_check
      _
    $region15: #{tpu_custom_call.1} parent=1 // pred_check_branch
      %43 = sbr.rel (0) target = $region17
    $region16: #{tpu_custom_call.1} parent=1 // pred_region
      %s45 = ssub.s32 4096, 4096
      %46 = vsyncadd [#allocation6], %s45
      %s47 = sshll.u32 [#allocation7], 4
      %s48 = int_to_ptr.vmem [resolvable:$true] %s47
      %53 = dma.hbm_to_vmem [thread:$0]  %s3, 4096, %s48, [#allocation6], 256, 256, 16
    $region17: #{tpu_custom_call.1} parent=1 // pred_fallthru
      _
    // Predicated region
    $region18: #{tpu_custom_call.1} parent=1 // pred_check
      _
    $region19: #{tpu_custom_call.1} parent=1 // pred_check_branch
      %55 = sbr.rel (0) target = $region21
    $region20: #{tpu_custom_call.1} parent=1 // pred_region
      _
    $region21: #{tpu_custom_call.1} parent=1 // pred_fallthru
      _
    // Predicated region
    $region22: #{tpu_custom_call.1} parent=1 // pred_check
      _
    $region23: #{tpu_custom_call.1} parent=1 // pred_check_branch
      %57 = sbr.rel (0) target = $region25
    $region24: #{tpu_custom_call.1} parent=1 // pred_region
      _
    $region25: #{tpu_custom_call.1} parent=1 // pred_fallthru
      _
    // Predicated region
    $region26: #{tpu_custom_call.1} parent=1 // pred_check
      _
    $region27: #{tpu_custom_call.1} parent=1 // pred_check_branch
      %59 = sbr.rel (0) target = $region29
    $region28: #{tpu_custom_call.1} parent=1 // pred_region
      _
    $region29: #{tpu_custom_call.1} parent=1 // pred_fallthru
      _
    // Predicated region
    $region30: #{tpu_custom_call.1} parent=1 // pred_check
      _
    $region31: #{tpu_custom_call.1} parent=1 // pred_check_branch
      %61 = sbr.rel (0) target = $region33
    $region32: #{tpu_custom_call.1} parent=1 // pred_region
      %62 = dma.done [#allocation4], 256
    $region33: #{tpu_custom_call.1} parent=1 // pred_fallthru
      _
    // Predicated region
    $region34: #{tpu_custom_call.1} parent=1 // pred_check
      _
    $region35: #{tpu_custom_call.1} parent=1 // pred_check_branch
      %64 = sbr.rel (0) target = $region37
    $region36: #{tpu_custom_call.1} parent=1 // pred_region
      %65 = dma.done [#allocation6], 4096
    $region37: #{tpu_custom_call.1} parent=1 // pred_fallthru
      _
    // Predicated region
    $region38: #{tpu_custom_call.1} parent=1 // pred_check
      _
    $region39: #{tpu_custom_call.1} parent=1 // pred_check_branch
      %67 = sbr.rel (0) target = $region41
    $region40: #{tpu_custom_call.1} parent=1 // pred_region
      %68 = dma.done [#allocation6], 4096
    $region41: #{tpu_custom_call.1} parent=1 // pred_fallthru
      _
    %v70 = vld [vmem:[#allocation5] sm:$0xff]
    %v71 = vld [vmem:[#allocation5 + $0x8] sm:$0xff]
    %v72 = vld [vmem:[#allocation5 + $0x10] sm:$0xff]
    %v73 = vld [vmem:[#allocation5 + $0x18] sm:$0xff]
    %v74 = vld [vmem:[#allocation5 + $0x20] sm:$0xff]
    %v75 = vld [vmem:[#allocation5 + $0x28] sm:$0xff]
    %v76 = vld [vmem:[#allocation5 + $0x30] sm:$0xff]
    %v77 = vld [vmem:[#allocation5 + $0x38] sm:$0xff]
    %v78 = vld [vmem:[#allocation5 + $0x40] sm:$0xff]
    %v79 = vld [vmem:[#allocation5 + $0x48] sm:$0xff]
    %v80 = vld [vmem:[#allocation5 + $0x50] sm:$0xff]
    %v81 = vld [vmem:[#allocation5 + $0x58] sm:$0xff]
    %v82 = vld [vmem:[#allocation5 + $0x60] sm:$0xff]
    %v83 = vld [vmem:[#allocation5 + $0x68] sm:$0xff]
    %v84 = vld [vmem:[#allocation5 + $0x70] sm:$0xff]
    %v85 = vld [vmem:[#allocation5 + $0x78] sm:$0xff]
    %v86 = vld [vmem:[#allocation5 + $0x80] sm:$0xff]
    %v87 = vld [vmem:[#allocation5 + $0x88] sm:$0xff]
    %v88 = vld [vmem:[#allocation5 + $0x90] sm:$0xff]
    %v89 = vld [vmem:[#allocation5 + $0x98] sm:$0xff]
    %v90 = vld [vmem:[#allocation5 + $0xa0] sm:$0xff]
    %v91 = vld [vmem:[#allocation5 + $0xa8] sm:$0xff]
    %v92 = vld [vmem:[#allocation5 + $0xb0] sm:$0xff]
    %v93 = vld [vmem:[#allocation5 + $0xb8] sm:$0xff]
    %v94 = vld [vmem:[#allocation5 + $0xc0] sm:$0xff]
    %v95 = vld [vmem:[#allocation5 + $0xc8] sm:$0xff]
    %v96 = vld [vmem:[#allocation5 + $0xd0] sm:$0xff]
    %v97 = vld [vmem:[#allocation5 + $0xd8] sm:$0xff]
    %v98 = vld [vmem:[#allocation5 + $0xe0] sm:$0xff]
    %v99 = vld [vmem:[#allocation5 + $0xe8] sm:$0xff]
    %v100 = vld [vmem:[#allocation5 + $0xf0] sm:$0xff]
    %v101 = vld [vmem:[#allocation5 + $0xf8] sm:$0xff]
    %v102 = vld [vmem:[%s2] sm:$0xf]
    %v103 = vld [vmem:[#allocation7] sm:$0xff]
    %v104 = vld [vmem:[#allocation7 + $0x8] sm:$0xff]
    %v105 = vld [vmem:[#allocation7 + $0x10] sm:$0xff]
    %v106 = vld [vmem:[#allocation7 + $0x18] sm:$0xff]
    %v107 = vld [vmem:[#allocation7 + $0x20] sm:$0xff]
    %v108 = vld [vmem:[#allocation7 + $0x28] sm:$0xff]
    %v109 = vld [vmem:[#allocation7 + $0x30] sm:$0xff]
    %v110 = vld [vmem:[#allocation7 + $0x38] sm:$0xff]
    %v111 = vld [vmem:[#allocation7 + $0x40] sm:$0xff]
    %v112 = vld [vmem:[#allocation7 + $0x48] sm:$0xff]
    %v113 = vld [vmem:[#allocation7 + $0x50] sm:$0xff]
    %v114 = vld [vmem:[#allocation7 + $0x58] sm:$0xff]
    %v115 = vld [vmem:[#allocation7 + $0x60] sm:$0xff]
    %v116 = vld [vmem:[#allocation7 + $0x68] sm:$0xff]
    %v117 = vld [vmem:[#allocation7 + $0x70] sm:$0xff]
    %v118 = vld [vmem:[#allocation7 + $0x78] sm:$0xff]
    %v119 = vld [vmem:[#allocation7 + $0x80] sm:$0xff]
    %v120 = vld [vmem:[#allocation7 + $0x88] sm:$0xff]
    %v121 = vld [vmem:[#allocation7 + $0x90] sm:$0xff]
    %v122 = vld [vmem:[#allocation7 + $0x98] sm:$0xff]
    %v123 = vld [vmem:[#allocation7 + $0xa0] sm:$0xff]
    %v124 = vld [vmem:[#allocation7 + $0xa8] sm:$0xff]
    %v125 = vld [vmem:[#allocation7 + $0xb0] sm:$0xff]
    %v126 = vld [vmem:[#allocation7 + $0xb8] sm:$0xff]
    %v127 = vld [vmem:[#allocation7 + $0xc0] sm:$0xff]
    %v128 = vld [vmem:[#allocation7 + $0xc8] sm:$0xff]
    %v129 = vld [vmem:[#allocation7 + $0xd0] sm:$0xff]
    %v130 = vld [vmem:[#allocation7 + $0xd8] sm:$0xff]
    %v131 = vld [vmem:[#allocation7 + $0xe0] sm:$0xff]
    %v132 = vld [vmem:[#allocation7 + $0xe8] sm:$0xff]
    %v133 = vld [vmem:[#allocation7 + $0xf0] sm:$0xff]
    %v134 = vld [vmem:[#allocation7 + $0xf8] sm:$0xff]
    %v135 = vld [vmem:[%s4] sm:$0xf]
    %v136 = vld [vmem:[#allocation3] sm:$0x3]
    %v137 = vadd.f32 %v136, 0.0
    %v138 = vpack.c.bf16 %v137, %v137
    %v140 = vlaneseq
    %v141 = vshrl.u32 %v140, 7
    %v142 = vsub.s32 0, %v141
    %v143 = vrot.slane %v102, %v142
    %v144 = vlaneseq
    %v145 = vshrl.u32 %v144, 7
    %v146 = vsub.s32 1, %v145
    %v147 = vrot.slane %v102, %v146
    %v148 = vlaneseq
    %v149 = vshrl.u32 %v148, 7
    %v150 = vsub.s32 2, %v149
    %v151 = vrot.slane %v102, %v150
    %v152 = vlaneseq
    %v153 = vshrl.u32 %v152, 7
    %v154 = vsub.s32 3, %v153
    %v155 = vrot.slane %v102, %v154
    %v192 = vunpack.c.l.b16 %v70
    %v193 = vunpack.c.h.b16 %v70
    %v194 = vunpack.c.l.b16 %v71
    %v195 = vunpack.c.h.b16 %v71
    %v196 = vunpack.c.l.b16 %v72
    %v197 = vunpack.c.h.b16 %v72
    %v198 = vunpack.c.l.b16 %v73
    %v199 = vunpack.c.h.b16 %v73
    %v200 = vunpack.c.l.b16 %v74
    %v201 = vunpack.c.h.b16 %v74
    %v202 = vunpack.c.l.b16 %v75
    %v203 = vunpack.c.h.b16 %v75
    %v204 = vunpack.c.l.b16 %v76
    %v205 = vunpack.c.h.b16 %v76
    %v206 = vunpack.c.l.b16 %v77
    %v207 = vunpack.c.h.b16 %v77
    %v208 = vunpack.c.l.b16 %v78
    %v209 = vunpack.c.h.b16 %v78
    %v210 = vunpack.c.l.b16 %v79
    %v211 = vunpack.c.h.b16 %v79
    %v212 = vunpack.c.l.b16 %v80
    %v213 = vunpack.c.h.b16 %v80
    %v214 = vunpack.c.l.b16 %v81
    %v215 = vunpack.c.h.b16 %v81
    %v216 = vunpack.c.l.b16 %v82
    %v217 = vunpack.c.h.b16 %v82
    %v218 = vunpack.c.l.b16 %v83
    %v219 = vunpack.c.h.b16 %v83
    %v220 = vunpack.c.l.b16 %v84
    %v221 = vunpack.c.h.b16 %v84
    %v222 = vunpack.c.l.b16 %v85
    %v223 = vunpack.c.h.b16 %v85
    %v224 = vunpack.c.l.b16 %v86
    %v225 = vunpack.c.h.b16 %v86
    %v226 = vunpack.c.l.b16 %v87
    %v227 = vunpack.c.h.b16 %v87
    %v228 = vunpack.c.l.b16 %v88
    %v229 = vunpack.c.h.b16 %v88
    %v230 = vunpack.c.l.b16 %v89
    %v231 = vunpack.c.h.b16 %v89
    %v232 = vunpack.c.l.b16 %v90
    %v233 = vunpack.c.h.b16 %v90
    %v234 = vunpack.c.l.b16 %v91
    %v235 = vunpack.c.h.b16 %v91
    %v236 = vunpack.c.l.b16 %v92
    %v237 = vunpack.c.h.b16 %v92
    %v238 = vunpack.c.l.b16 %v93
    %v239 = vunpack.c.h.b16 %v93
    %v240 = vunpack.c.l.b16 %v94
    %v241 = vunpack.c.h.b16 %v94
    %v242 = vunpack.c.l.b16 %v95
    %v243 = vunpack.c.h.b16 %v95
    %v244 = vunpack.c.l.b16 %v96
    %v245 = vunpack.c.h.b16 %v96
    %v246 = vunpack.c.l.b16 %v97
    %v247 = vunpack.c.h.b16 %v97
    %v248 = vunpack.c.l.b16 %v98
    %v249 = vunpack.c.h.b16 %v98
    %v250 = vunpack.c.l.b16 %v99
    %v251 = vunpack.c.h.b16 %v99
    %v252 = vunpack.c.l.b16 %v100
    %v253 = vunpack.c.h.b16 %v100
    %v254 = vunpack.c.l.b16 %v101
    %v255 = vunpack.c.h.b16 %v101
    %v256 = vpack.c.b16 %v196, %v192
    %v257 = vpack.c.b16 %v197, %v193
    %v258 = vpack.c.b16 %v198, %v194
    %v259 = vpack.c.b16 %v199, %v195
    %v260 = vpack.c.b16 %v204, %v200
    %v261 = vpack.c.b16 %v205, %v201
    %v262 = vpack.c.b16 %v206, %v202
    %v263 = vpack.c.b16 %v207, %v203
    %v264 = vpack.c.b16 %v212, %v208
    %v265 = vpack.c.b16 %v213, %v209
    %v266 = vpack.c.b16 %v214, %v210
    %v267 = vpack.c.b16 %v215, %v211
    %v268 = vpack.c.b16 %v220, %v216
    %v269 = vpack.c.b16 %v221, %v217
    %v270 = vpack.c.b16 %v222, %v218
    %v271 = vpack.c.b16 %v223, %v219
    %v272 = vpack.c.b16 %v228, %v224
    %v273 = vpack.c.b16 %v229, %v225
    %v274 = vpack.c.b16 %v230, %v226
    %v275 = vpack.c.b16 %v231, %v227
    %v276 = vpack.c.b16 %v236, %v232
    %v277 = vpack.c.b16 %v237, %v233
    %v278 = vpack.c.b16 %v238, %v234
    %v279 = vpack.c.b16 %v239, %v235
    %v280 = vpack.c.b16 %v244, %v240
    %v281 = vpack.c.b16 %v245, %v241
    %v282 = vpack.c.b16 %v246, %v242
    %v283 = vpack.c.b16 %v247, %v243
    %v284 = vpack.c.b16 %v252, %v248
    %v285 = vpack.c.b16 %v253, %v249
    %v286 = vpack.c.b16 %v254, %v250
    %v287 = vpack.c.b16 %v255, %v251
    %320 = vmatprep.subr.bf16.mxu0 %v257
    %321 = vmatpush1.bf16.msra.mxu0 %v256
    %322 = vmatprep.subr.bf16.mxu0 %v261
    %323 = vmatpush1.bf16.msra.mxu0 %v260
    %324 = vmatprep.subr.bf16.mxu0 %v265
    %325 = vmatpush1.bf16.msra.mxu0 %v264
    %326 = vmatprep.subr.bf16.mxu0 %v269
    %327 = vmatpush1.bf16.msra.mxu0 %v268
    %328 = vmatprep.subr.bf16.mxu0 %v273
    %329 = vmatpush1.bf16.msra.mxu0 %v272
    %330 = vmatprep.subr.bf16.mxu0 %v277
    %331 = vmatpush1.bf16.msra.mxu0 %v276
    %332 = vmatprep.subr.bf16.mxu0 %v281
    %333 = vmatpush1.bf16.msra.mxu0 %v280
    %334 = vmatprep.subr.bf16.mxu0 %v285
    %335 = vmatpush1.bf16.msra.mxu0 %v284
    %336 = vmatprep.subr.bf16.mxu0 0
    %337 = vmatpush1.bf16.msra.mxu0 0
    %338 = vmatprep.subr.bf16.mxu0 0
    %339 = vmatpush1.bf16.msra.mxu0 0
    %340 = vmatprep.subr.bf16.mxu0 0
    %341 = vmatpush1.bf16.msra.mxu0 0
    %342 = vmatprep.subr.bf16.mxu0 0
    %343 = vmatpush1.bf16.msra.mxu0 0
    %344 = vmatprep.subr.bf16.mxu0 0
    %345 = vmatpush1.bf16.msra.mxu0 0
    %346 = vmatprep.subr.bf16.mxu0 0
    %347 = vmatpush1.bf16.msra.mxu0 0
    %348 = vmatprep.subr.bf16.mxu0 0
    %349 = vmatpush1.bf16.msra.mxu0 0
    %350 = vmatprep.subr.bf16.mxu0 0
    %351 = vmatpush1.bf16.msra.mxu0 0
    %352 = vmatprep.mubr.bf16.mxu0 0
    %353 = vmatmul.mubr.bf16.gmra.mrb[0].mxu0 %v138
    %v354 = vpop.f32.mrb[0].mxu0
    %v355 = vadd.f32 %v143, %v354
    %v356 = vpop.f32.mrb[0].mxu0
    %v357 = vadd.f32 %v147, %v356
    %v358 = vpop.f32.mrb[0].mxu0
    %v359 = vpop.f32.mrb[0].mxu0
    %360 = vdwg.mxu0
    %361 = vmatprep.subr.bf16.mxu0 %v259
    %362 = vmatpush1.bf16.msra.mxu0 %v258
    %363 = vmatprep.subr.bf16.mxu0 %v263
    %364 = vmatpush1.bf16.msra.mxu0 %v262
    %365 = vmatprep.subr.bf16.mxu0 %v267
    %366 = vmatpush1.bf16.msra.mxu0 %v266
    %367 = vmatprep.subr.bf16.mxu0 %v271
    %368 = vmatpush1.bf16.msra.mxu0 %v270
    %369 = vmatprep.subr.bf16.mxu0 %v275
    %370 = vmatpush1.bf16.msra.mxu0 %v274
    %371 = vmatprep.subr.bf16.mxu0 %v279
    %372 = vmatpush1.bf16.msra.mxu0 %v278
    %373 = vmatprep.subr.bf16.mxu0 %v283
    %374 = vmatpush1.bf16.msra.mxu0 %v282
    %375 = vmatprep.subr.bf16.mxu0 %v287
    %376 = vmatpush1.bf16.msra.mxu0 %v286
    %377 = vmatprep.subr.bf16.mxu0 0
    %378 = vmatpush1.bf16.msra.mxu0 0
    %379 = vmatprep.subr.bf16.mxu0 0
    %380 = vmatpush1.bf16.msra.mxu0 0
    %381 = vmatprep.subr.bf16.mxu0 0
    %382 = vmatpush1.bf16.msra.mxu0 0
    %383 = vmatprep.subr.bf16.mxu0 0
    %384 = vmatpush1.bf16.msra.mxu0 0
    %385 = vmatprep.subr.bf16.mxu0 0
    %386 = vmatpush1.bf16.msra.mxu0 0
    %387 = vmatprep.subr.bf16.mxu0 0
    %388 = vmatpush1.bf16.msra.mxu0 0
    %389 = vmatprep.subr.bf16.mxu0 0
    %390 = vmatpush1.bf16.msra.mxu0 0
    %391 = vmatprep.subr.bf16.mxu0 0
    %392 = vmatpush1.bf16.msra.mxu0 0
    %393 = vmatprep.mubr.bf16.mxu0 0
    %394 = vmatmul.mubr.bf16.gmra.mrb[0].mxu0 %v138
    %v395 = vpop.f32.mrb[0].mxu0
    %v396 = vadd.f32 %v151, %v395
    %v397 = vpop.f32.mrb[0].mxu0
    %v398 = vadd.f32 %v155, %v397
    %v399 = vpop.f32.mrb[0].mxu0
    %v400 = vpop.f32.mrb[0].mxu0
    %401 = vdwg.mxu0
    %v402 = vxor.u32 %v355, 2147483648
    %v403 = vmul.f32 %v402, 1.442695
    %v404 = vpow.pop %v403
    %v405 = vadd.f32 %v404, 1.0
    %v406 = vrcp.pop %v405
    %v407 = vmul.f32 1.0, %v406
    %v408 = vxor.u32 %v357, 2147483648
    %v409 = vmul.f32 %v408, 1.442695
    %v410 = vpow.pop %v409
    %v411 = vadd.f32 %v410, 1.0
    %v412 = vrcp.pop %v411
    %v413 = vmul.f32 1.0, %v412
    %v414 = vmul.f32 %v407, %v398
    %v415 = vadd.f32 %v396, %v414
    %v416 = vtanh.pop %v415
    %v417 = vsub.f32 1.0, %v413
    %v418 = vmul.f32 %v417, %v416
    %v419 = vmul.f32 %v413, 0.0
    %v420 = vadd.f32 %v418, %v419
    %v421 = vadd.f32 %v420, 0.0
    %v422 = vpack.c.bf16 %v421, %v421
    %v424 = vlaneseq
    %v425 = vshrl.u32 %v424, 7
    %v426 = vsub.s32 0, %v425
    %v427 = vrot.slane %v135, %v426
    %v428 = vlaneseq
    %v429 = vshrl.u32 %v428, 7
    %v430 = vsub.s32 1, %v429
    %v431 = vrot.slane %v135, %v430
    %v432 = vlaneseq
    %v433 = vshrl.u32 %v432, 7
    %v434 = vsub.s32 2, %v433
    %v435 = vrot.slane %v135, %v434
    %v436 = vlaneseq
    %v437 = vshrl.u32 %v436, 7
    %v438 = vsub.s32 3, %v437
    %v439 = vrot.slane %v135, %v438
    %v476 = vunpack.c.l.b16 %v103
    %v477 = vunpack.c.h.b16 %v103
    %v478 = vunpack.c.l.b16 %v104
    %v479 = vunpack.c.h.b16 %v104
    %v480 = vunpack.c.l.b16 %v105
    %v481 = vunpack.c.h.b16 %v105
    %v482 = vunpack.c.l.b16 %v106
    %v483 = vunpack.c.h.b16 %v106
    %v484 = vunpack.c.l.b16 %v107
    %v485 = vunpack.c.h.b16 %v107
    %v486 = vunpack.c.l.b16 %v108
    %v487 = vunpack.c.h.b16 %v108
    %v488 = vunpack.c.l.b16 %v109
    %v489 = vunpack.c.h.b16 %v109
    %v490 = vunpack.c.l.b16 %v110
    %v491 = vunpack.c.h.b16 %v110
    %v492 = vunpack.c.l.b16 %v111
    %v493 = vunpack.c.h.b16 %v111
    %v494 = vunpack.c.l.b16 %v112
    %v495 = vunpack.c.h.b16 %v112
    %v496 = vunpack.c.l.b16 %v113
    %v497 = vunpack.c.h.b16 %v113
    %v498 = vunpack.c.l.b16 %v114
    %v499 = vunpack.c.h.b16 %v114
    %v500 = vunpack.c.l.b16 %v115
    %v501 = vunpack.c.h.b16 %v115
    %v502 = vunpack.c.l.b16 %v116
    %v503 = vunpack.c.h.b16 %v116
    %v504 = vunpack.c.l.b16 %v117
    %v505 = vunpack.c.h.b16 %v117
    %v506 = vunpack.c.l.b16 %v118
    %v507 = vunpack.c.h.b16 %v118
    %v508 = vunpack.c.l.b16 %v119
    %v509 = vunpack.c.h.b16 %v119
    %v510 = vunpack.c.l.b16 %v120
    %v511 = vunpack.c.h.b16 %v120
    %v512 = vunpack.c.l.b16 %v121
    %v513 = vunpack.c.h.b16 %v121
    %v514 = vunpack.c.l.b16 %v122
    %v515 = vunpack.c.h.b16 %v122
    %v516 = vunpack.c.l.b16 %v123
    %v517 = vunpack.c.h.b16 %v123
    %v518 = vunpack.c.l.b16 %v124
    %v519 = vunpack.c.h.b16 %v124
    %v520 = vunpack.c.l.b16 %v125
    %v521 = vunpack.c.h.b16 %v125
    %v522 = vunpack.c.l.b16 %v126
    %v523 = vunpack.c.h.b16 %v126
    %v524 = vunpack.c.l.b16 %v127
    %v525 = vunpack.c.h.b16 %v127
    %v526 = vunpack.c.l.b16 %v128
    %v527 = vunpack.c.h.b16 %v128
    %v528 = vunpack.c.l.b16 %v129
    %v529 = vunpack.c.h.b16 %v129
    %v530 = vunpack.c.l.b16 %v130
    %v531 = vunpack.c.h.b16 %v130
    %v532 = vunpack.c.l.b16 %v131
    %v533 = vunpack.c.h.b16 %v131
    %v534 = vunpack.c.l.b16 %v132
    %v535 = vunpack.c.h.b16 %v132
    %v536 = vunpack.c.l.b16 %v133
    %v537 = vunpack.c.h.b16 %v133
    %v538 = vunpack.c.l.b16 %v134
    %v539 = vunpack.c.h.b16 %v134
    %v540 = vpack.c.b16 %v480, %v476
    %v541 = vpack.c.b16 %v481, %v477
    %v542 = vpack.c.b16 %v482, %v478
    %v543 = vpack.c.b16 %v483, %v479
    %v544 = vpack.c.b16 %v488, %v484
    %v545 = vpack.c.b16 %v489, %v485
    %v546 = vpack.c.b16 %v490, %v486
    %v547 = vpack.c.b16 %v491, %v487
    %v548 = vpack.c.b16 %v496, %v492
    %v549 = vpack.c.b16 %v497, %v493
    %v550 = vpack.c.b16 %v498, %v494
    %v551 = vpack.c.b16 %v499, %v495
    %v552 = vpack.c.b16 %v504, %v500
    %v553 = vpack.c.b16 %v505, %v501
    %v554 = vpack.c.b16 %v506, %v502
    %v555 = vpack.c.b16 %v507, %v503
    %v556 = vpack.c.b16 %v512, %v508
    %v557 = vpack.c.b16 %v513, %v509
    %v558 = vpack.c.b16 %v514, %v510
    %v559 = vpack.c.b16 %v515, %v511
    %v560 = vpack.c.b16 %v520, %v516
    %v561 = vpack.c.b16 %v521, %v517
    %v562 = vpack.c.b16 %v522, %v518
    %v563 = vpack.c.b16 %v523, %v519
    %v564 = vpack.c.b16 %v528, %v524
    %v565 = vpack.c.b16 %v529, %v525
    %v566 = vpack.c.b16 %v530, %v526
    %v567 = vpack.c.b16 %v531, %v527
    %v568 = vpack.c.b16 %v536, %v532
    %v569 = vpack.c.b16 %v537, %v533
    %v570 = vpack.c.b16 %v538, %v534
    %v571 = vpack.c.b16 %v539, %v535
    %604 = vmatprep.subr.bf16.mxu0 %v541
    %605 = vmatpush1.bf16.msra.mxu0 %v540
    %606 = vmatprep.subr.bf16.mxu0 %v545
    %607 = vmatpush1.bf16.msra.mxu0 %v544
    %608 = vmatprep.subr.bf16.mxu0 %v549
    %609 = vmatpush1.bf16.msra.mxu0 %v548
    %610 = vmatprep.subr.bf16.mxu0 %v553
    %611 = vmatpush1.bf16.msra.mxu0 %v552
    %612 = vmatprep.subr.bf16.mxu0 %v557
    %613 = vmatpush1.bf16.msra.mxu0 %v556
    %614 = vmatprep.subr.bf16.mxu0 %v561
    %615 = vmatpush1.bf16.msra.mxu0 %v560
    %616 = vmatprep.subr.bf16.mxu0 %v565
    %617 = vmatpush1.bf16.msra.mxu0 %v564
    %618 = vmatprep.subr.bf16.mxu0 %v569
    %619 = vmatpush1.bf16.msra.mxu0 %v568
    %620 = vmatprep.subr.bf16.mxu0 0
    %621 = vmatpush1.bf16.msra.mxu0 0
    %622 = vmatprep.subr.bf16.mxu0 0
    %623 = vmatpush1.bf16.msra.mxu0 0
    %624 = vmatprep.subr.bf16.mxu0 0
    %625 = vmatpush1.bf16.msra.mxu0 0
    %626 = vmatprep.subr.bf16.mxu0 0
    %627 = vmatpush1.bf16.msra.mxu0 0
    %628 = vmatprep.subr.bf16.mxu0 0
    %629 = vmatpush1.bf16.msra.mxu0 0
    %630 = vmatprep.subr.bf16.mxu0 0
    %631 = vmatpush1.bf16.msra.mxu0 0
    %632 = vmatprep.subr.bf16.mxu0 0
    %633 = vmatpush1.bf16.msra.mxu0 0
    %634 = vmatprep.subr.bf16.mxu0 0
    %635 = vmatpush1.bf16.msra.mxu0 0
    %636 = vmatprep.mubr.bf16.mxu0 0
    %637 = vmatmul.mubr.bf16.gmra.mrb[0].mxu0 %v422
    %v638 = vpop.f32.mrb[0].mxu0
    %v639 = vadd.f32 %v427, %v638
    %v640 = vpop.f32.mrb[0].mxu0
    %v641 = vadd.f32 %v431, %v640
    %v642 = vpop.f32.mrb[0].mxu0
    %v643 = vpop.f32.mrb[0].mxu0
    %644 = vdwg.mxu0
    %645 = vmatprep.subr.bf16.mxu0 %v543
    %646 = vmatpush1.bf16.msra.mxu0 %v542
    %647 = vmatprep.subr.bf16.mxu0 %v547
    %648 = vmatpush1.bf16.msra.mxu0 %v546
    %649 = vmatprep.subr.bf16.mxu0 %v551
    %650 = vmatpush1.bf16.msra.mxu0 %v550
    %651 = vmatprep.subr.bf16.mxu0 %v555
    %652 = vmatpush1.bf16.msra.mxu0 %v554
    %653 = vmatprep.subr.bf16.mxu0 %v559
    %654 = vmatpush1.bf16.msra.mxu0 %v558
    %655 = vmatprep.subr.bf16.mxu0 %v563
    %656 = vmatpush1.bf16.msra.mxu0 %v562
    %657 = vmatprep.subr.bf16.mxu0 %v567
    %658 = vmatpush1.bf16.msra.mxu0 %v566
    %659 = vmatprep.subr.bf16.mxu0 %v571
    %660 = vmatpush1.bf16.msra.mxu0 %v570
    %661 = vmatprep.subr.bf16.mxu0 0
    %662 = vmatpush1.bf16.msra.mxu0 0
    %663 = vmatprep.subr.bf16.mxu0 0
    %664 = vmatpush1.bf16.msra.mxu0 0
    %665 = vmatprep.subr.bf16.mxu0 0
    %666 = vmatpush1.bf16.msra.mxu0 0
    %667 = vmatprep.subr.bf16.mxu0 0
    %668 = vmatpush1.bf16.msra.mxu0 0
    %669 = vmatprep.subr.bf16.mxu0 0
    %670 = vmatpush1.bf16.msra.mxu0 0
    %671 = vmatprep.subr.bf16.mxu0 0
    %672 = vmatpush1.bf16.msra.mxu0 0
    %673 = vmatprep.subr.bf16.mxu0 0
    %674 = vmatpush1.bf16.msra.mxu0 0
    %675 = vmatprep.subr.bf16.mxu0 0
    %676 = vmatpush1.bf16.msra.mxu0 0
    %677 = vmatprep.mubr.bf16.mxu0 0
    %678 = vmatmul.mubr.bf16.gmra.mrb[0].mxu0 %v422
    %v679 = vpop.f32.mrb[0].mxu0
    %v680 = vadd.f32 %v435, %v679
    %v681 = vpop.f32.mrb[0].mxu0
    %v682 = vadd.f32 %v439, %v681
    %v683 = vpop.f32.mrb[0].mxu0
    %v684 = vpop.f32.mrb[0].mxu0
    %685 = vdwg.mxu0
    %v686 = vxor.u32 %v639, 2147483648
    %v687 = vmul.f32 %v686, 1.442695
    %v688 = vpow.pop %v687
    %v689 = vadd.f32 %v688, 1.0
    %v690 = vrcp.pop %v689
    %v691 = vmul.f32 1.0, %v690
    %v692 = vxor.u32 %v641, 2147483648
    %v693 = vmul.f32 %v692, 1.442695
    %v694 = vpow.pop %v693
    %v695 = vadd.f32 %v694, 1.0
    %v696 = vrcp.pop %v695
    %v697 = vmul.f32 1.0, %v696
    %v698 = vmul.f32 %v691, %v682
    %v699 = vadd.f32 %v680, %v698
    %v700 = vtanh.pop %v699
    %v701 = vsub.f32 1.0, %v697
    %v702 = vmul.f32 %v701, %v700
    %v703 = vmul.f32 %v697, 0.0
    %v704 = vadd.f32 %v702, %v703
    %s705 = scalar_lea.vmem [#allocation3], 2
    %v706 = vld [vmem:[%s705] sm:$0x3]
    %v707 = vadd.f32 %v706, %v420
    %v708 = vpack.c.bf16 %v707, %v707
    %709 = vmatprep.subr.bf16.mxu0 %v257
    %710 = vmatpush1.bf16.msra.mxu0 %v256
    %711 = vmatprep.subr.bf16.mxu0 %v261
    %712 = vmatpush1.bf16.msra.mxu0 %v260
    %713 = vmatprep.subr.bf16.mxu0 %v265
    %714 = vmatpush1.bf16.msra.mxu0 %v264
    %715 = vmatprep.subr.bf16.mxu0 %v269
    %716 = vmatpush1.bf16.msra.mxu0 %v268
    %717 = vmatprep.subr.bf16.mxu0 %v273
    %718 = vmatpush1.bf16.msra.mxu0 %v272
    %719 = vmatprep.subr.bf16.mxu0 %v277
    %720 = vmatpush1.bf16.msra.mxu0 %v276
    %721 = vmatprep.subr.bf16.mxu0 %v281
    %722 = vmatpush1.bf16.msra.mxu0 %v280
    %723 = vmatprep.subr.bf16.mxu0 %v285
    %724 = vmatpush1.bf16.msra.mxu0 %v284
    %725 = vmatprep.subr.bf16.mxu0 0
    %726 = vmatpush1.bf16.msra.mxu0 0
    %727 = vmatprep.subr.bf16.mxu0 0
    %728 = vmatpush1.bf16.msra.mxu0 0
    %729 = vmatprep.subr.bf16.mxu0 0
    %730 = vmatpush1.bf16.msra.mxu0 0
    %731 = vmatprep.subr.bf16.mxu0 0
    %732 = vmatpush1.bf16.msra.mxu0 0
    %733 = vmatprep.subr.bf16.mxu0 0
    %734 = vmatpush1.bf16.msra.mxu0 0
    %735 = vmatprep.subr.bf16.mxu0 0
    %736 = vmatpush1.bf16.msra.mxu0 0
    %737 = vmatprep.subr.bf16.mxu0 0
    %738 = vmatpush1.bf16.msra.mxu0 0
    %739 = vmatprep.subr.bf16.mxu0 0
    %740 = vmatpush1.bf16.msra.mxu0 0
    %741 = vmatprep.mubr.bf16.mxu0 0
    %742 = vmatmul.mubr.bf16.gmra.mrb[0].mxu0 %v708
    %v743 = vpop.f32.mrb[0].mxu0
    %v744 = vadd.f32 %v143, %v743
    %v745 = vpop.f32.mrb[0].mxu0
    %v746 = vadd.f32 %v147, %v745
    %v747 = vpop.f32.mrb[0].mxu0
    %v748 = vpop.f32.mrb[0].mxu0
    %749 = vdwg.mxu0
    %750 = vmatprep.subr.bf16.mxu0 %v259
    %751 = vmatpush1.bf16.msra.mxu0 %v258
    %752 = vmatprep.subr.bf16.mxu0 %v263
    %753 = vmatpush1.bf16.msra.mxu0 %v262
    %754 = vmatprep.subr.bf16.mxu0 %v267
    %755 = vmatpush1.bf16.msra.mxu0 %v266
    %756 = vmatprep.subr.bf16.mxu0 %v271
    %757 = vmatpush1.bf16.msra.mxu0 %v270
    %758 = vmatprep.subr.bf16.mxu0 %v275
    %759 = vmatpush1.bf16.msra.mxu0 %v274
    %760 = vmatprep.subr.bf16.mxu0 %v279
    %761 = vmatpush1.bf16.msra.mxu0 %v278
    %762 = vmatprep.subr.bf16.mxu0 %v283
    %763 = vmatpush1.bf16.msra.mxu0 %v282
    %764 = vmatprep.subr.bf16.mxu0 %v287
    %765 = vmatpush1.bf16.msra.mxu0 %v286
    %766 = vmatprep.subr.bf16.mxu0 0
    %767 = vmatpush1.bf16.msra.mxu0 0
    %768 = vmatprep.subr.bf16.mxu0 0
    %769 = vmatpush1.bf16.msra.mxu0 0
    %770 = vmatprep.subr.bf16.mxu0 0
    %771 = vmatpush1.bf16.msra.mxu0 0
    %772 = vmatprep.subr.bf16.mxu0 0
    %773 = vmatpush1.bf16.msra.mxu0 0
    %774 = vmatprep.subr.bf16.mxu0 0
    %775 = vmatpush1.bf16.msra.mxu0 0
    %776 = vmatprep.subr.bf16.mxu0 0
    %777 = vmatpush1.bf16.msra.mxu0 0
    %778 = vmatprep.subr.bf16.mxu0 0
    %779 = vmatpush1.bf16.msra.mxu0 0
    %780 = vmatprep.subr.bf16.mxu0 0
    %781 = vmatpush1.bf16.msra.mxu0 0
    %782 = vmatprep.mubr.bf16.mxu0 0
    %783 = vmatmul.mubr.bf16.gmra.mrb[0].mxu0 %v708
    %v784 = vpop.f32.mrb[0].mxu0
    %v785 = vadd.f32 %v151, %v784
    %v786 = vpop.f32.mrb[0].mxu0
    %v787 = vadd.f32 %v155, %v786
    %v788 = vpop.f32.mrb[0].mxu0
    %v789 = vpop.f32.mrb[0].mxu0
    %790 = vdwg.mxu0
    %v791 = vxor.u32 %v744, 2147483648
    %v792 = vmul.f32 %v791, 1.442695
    %v793 = vpow.pop %v792
    %v794 = vadd.f32 %v793, 1.0
    %v795 = vrcp.pop %v794
    %v796 = vmul.f32 1.0, %v795
    %v797 = vxor.u32 %v746, 2147483648
    %v798 = vmul.f32 %v797, 1.442695
    %v799 = vpow.pop %v798
    %v800 = vadd.f32 %v799, 1.0
    %v801 = vrcp.pop %v800
    %v802 = vmul.f32 1.0, %v801
    %v803 = vmul.f32 %v796, %v787
    %v804 = vadd.f32 %v785, %v803
    %v805 = vtanh.pop %v804
    %v806 = vsub.f32 1.0, %v802
    %v807 = vmul.f32 %v806, %v805
    %v808 = vmul.f32 %v802, %v420
    %v809 = vadd.f32 %v807, %v808
    %v810 = vadd.f32 %v809, %v704
    %v811 = vpack.c.bf16 %v810, %v810
    %812 = vmatprep.subr.bf16.mxu0 %v541
    %813 = vmatpush1.bf16.msra.mxu0 %v540
    %814 = vmatprep.subr.bf16.mxu0 %v545
    %815 = vmatpush1.bf16.msra.mxu0 %v544
    %816 = vmatprep.subr.bf16.mxu0 %v549
    %817 = vmatpush1.bf16.msra.mxu0 %v548
    %818 = vmatprep.subr.bf16.mxu0 %v553
    %819 = vmatpush1.bf16.msra.mxu0 %v552
    %820 = vmatprep.subr.bf16.mxu0 %v557
    %821 = vmatpush1.bf16.msra.mxu0 %v556
    %822 = vmatprep.subr.bf16.mxu0 %v561
    %823 = vmatpush1.bf16.msra.mxu0 %v560
    %824 = vmatprep.subr.bf16.mxu0 %v565
    %825 = vmatpush1.bf16.msra.mxu0 %v564
    %826 = vmatprep.subr.bf16.mxu0 %v569
    %827 = vmatpush1.bf16.msra.mxu0 %v568
    %828 = vmatprep.subr.bf16.mxu0 0
    %829 = vmatpush1.bf16.msra.mxu0 0
    %830 = vmatprep.subr.bf16.mxu0 0
    %831 = vmatpush1.bf16.msra.mxu0 0
    %832 = vmatprep.subr.bf16.mxu0 0
    %833 = vmatpush1.bf16.msra.mxu0 0
    %834 = vmatprep.subr.bf16.mxu0 0
    %835 = vmatpush1.bf16.msra.mxu0 0
    %836 = vmatprep.subr.bf16.mxu0 0
    %837 = vmatpush1.bf16.msra.mxu0 0
    %838 = vmatprep.subr.bf16.mxu0 0
    %839 = vmatpush1.bf16.msra.mxu0 0
    %840 = vmatprep.subr.bf16.mxu0 0
    %841 = vmatpush1.bf16.msra.mxu0 0
    %842 = vmatprep.subr.bf16.mxu0 0
    %843 = vmatpush1.bf16.msra.mxu0 0
    %844 = vmatprep.mubr.bf16.mxu0 0
    %845 = vmatmul.mubr.bf16.gmra.mrb[0].mxu0 %v811
    %v846 = vpop.f32.mrb[0].mxu0
    %v847 = vadd.f32 %v427, %v846
    %v848 = vpop.f32.mrb[0].mxu0
    %v849 = vadd.f32 %v431, %v848
    %v850 = vpop.f32.mrb[0].mxu0
    %v851 = vpop.f32.mrb[0].mxu0
    %852 = vdwg.mxu0
    %853 = vmatprep.subr.bf16.mxu0 %v543
    %854 = vmatpush1.bf16.msra.mxu0 %v542
    %855 = vmatprep.subr.bf16.mxu0 %v547
    %856 = vmatpush1.bf16.msra.mxu0 %v546
    %857 = vmatprep.subr.bf16.mxu0 %v551
    %858 = vmatpush1.bf16.msra.mxu0 %v550
    %859 = vmatprep.subr.bf16.mxu0 %v555
    %860 = vmatpush1.bf16.msra.mxu0 %v554
    %861 = vmatprep.subr.bf16.mxu0 %v559
    %862 = vmatpush1.bf16.msra.mxu0 %v558
    %863 = vmatprep.subr.bf16.mxu0 %v563
    %864 = vmatpush1.bf16.msra.mxu0 %v562
    %865 = vmatprep.subr.bf16.mxu0 %v567
    %866 = vmatpush1.bf16.msra.mxu0 %v566
    %867 = vmatprep.subr.bf16.mxu0 %v571
    %868 = vmatpush1.bf16.msra.mxu0 %v570
    %869 = vmatprep.subr.bf16.mxu0 0
    %870 = vmatpush1.bf16.msra.mxu0 0
    %871 = vmatprep.subr.bf16.mxu0 0
    %872 = vmatpush1.bf16.msra.mxu0 0
    %873 = vmatprep.subr.bf16.mxu0 0
    %874 = vmatpush1.bf16.msra.mxu0 0
    %875 = vmatprep.subr.bf16.mxu0 0
    %876 = vmatpush1.bf16.msra.mxu0 0
    %877 = vmatprep.subr.bf16.mxu0 0
    %878 = vmatpush1.bf16.msra.mxu0 0
    %879 = vmatprep.subr.bf16.mxu0 0
    %880 = vmatpush1.bf16.msra.mxu0 0
    %881 = vmatprep.subr.bf16.mxu0 0
    %882 = vmatpush1.bf16.msra.mxu0 0
    %883 = vmatprep.subr.bf16.mxu0 0
    %884 = vmatpush1.bf16.msra.mxu0 0
    %885 = vmatprep.mubr.bf16.mxu0 0
    %886 = vmatmul.mubr.bf16.gmra.mrb[0].mxu0 %v811
    %v887 = vpop.f32.mrb[0].mxu0
    %v888 = vadd.f32 %v435, %v887
    %v889 = vpop.f32.mrb[0].mxu0
    %v890 = vadd.f32 %v439, %v889
    %v891 = vpop.f32.mrb[0].mxu0
    %v892 = vpop.f32.mrb[0].mxu0
    %893 = vdwg.mxu0
    %v894 = vxor.u32 %v847, 2147483648
    %v895 = vmul.f32 %v894, 1.442695
    %v896 = vpow.pop %v895
    %v897 = vadd.f32 %v896, 1.0
    %v898 = vrcp.pop %v897
    %v899 = vmul.f32 1.0, %v898
    %v900 = vxor.u32 %v849, 2147483648
    %v901 = vmul.f32 %v900, 1.442695
    %v902 = vpow.pop %v901
    %v903 = vadd.f32 %v902, 1.0
    %v904 = vrcp.pop %v903
    %v905 = vmul.f32 1.0, %v904
    %v906 = vmul.f32 %v899, %v890
    %v907 = vadd.f32 %v888, %v906
    %v908 = vtanh.pop %v907
    %v909 = vsub.f32 1.0, %v905
    %v910 = vmul.f32 %v909, %v908
    %v911 = vmul.f32 %v905, %v704
    %v912 = vadd.f32 %v910, %v911
    %s913 = scalar_lea.vmem [#allocation3], 4
    %v914 = vld [vmem:[%s913] sm:$0x3]
    %v915 = vadd.f32 %v914, %v809
    %v916 = vpack.c.bf16 %v915, %v915
    %917 = vmatprep.subr.bf16.mxu0 %v257
    %918 = vmatpush1.bf16.msra.mxu0 %v256
    %919 = vmatprep.subr.bf16.mxu0 %v261
    %920 = vmatpush1.bf16.msra.mxu0 %v260
    %921 = vmatprep.subr.bf16.mxu0 %v265
    %922 = vmatpush1.bf16.msra.mxu0 %v264
    %923 = vmatprep.subr.bf16.mxu0 %v269
    %924 = vmatpush1.bf16.msra.mxu0 %v268
    %925 = vmatprep.subr.bf16.mxu0 %v273
    %926 = vmatpush1.bf16.msra.mxu0 %v272
    %927 = vmatprep.subr.bf16.mxu0 %v277
    %928 = vmatpush1.bf16.msra.mxu0 %v276
    %929 = vmatprep.subr.bf16.mxu0 %v281
    %930 = vmatpush1.bf16.msra.mxu0 %v280
    %931 = vmatprep.subr.bf16.mxu0 %v285
    %932 = vmatpush1.bf16.msra.mxu0 %v284
    %933 = vmatprep.subr.bf16.mxu0 0
    %934 = vmatpush1.bf16.msra.mxu0 0
    %935 = vmatprep.subr.bf16.mxu0 0
    %936 = vmatpush1.bf16.msra.mxu0 0
    %937 = vmatprep.subr.bf16.mxu0 0
    %938 = vmatpush1.bf16.msra.mxu0 0
    %939 = vmatprep.subr.bf16.mxu0 0
    %940 = vmatpush1.bf16.msra.mxu0 0
    %941 = vmatprep.subr.bf16.mxu0 0
    %942 = vmatpush1.bf16.msra.mxu0 0
    %943 = vmatprep.subr.bf16.mxu0 0
    %944 = vmatpush1.bf16.msra.mxu0 0
    %945 = vmatprep.subr.bf16.mxu0 0
    %946 = vmatpush1.bf16.msra.mxu0 0
    %947 = vmatprep.subr.bf16.mxu0 0
    %948 = vmatpush1.bf16.msra.mxu0 0
    %949 = vmatprep.mubr.bf16.mxu0 0
    %950 = vmatmul.mubr.bf16.gmra.mrb[0].mxu0 %v916
    %v951 = vpop.f32.mrb[0].mxu0
    %v952 = vadd.f32 %v143, %v951
    %v953 = vpop.f32.mrb[0].mxu0
    %v954 = vadd.f32 %v147, %v953
    %v955 = vpop.f32.mrb[0].mxu0
    %v956 = vpop.f32.mrb[0].mxu0
    %957 = vdwg.mxu0
    %958 = vmatprep.subr.bf16.mxu0 %v259
    %959 = vmatpush1.bf16.msra.mxu0 %v258
    %960 = vmatprep.subr.bf16.mxu0 %v263
    %961 = vmatpush1.bf16.msra.mxu0 %v262
    %962 = vmatprep.subr.bf16.mxu0 %v267
    %963 = vmatpush1.bf16.msra.mxu0 %v266
    %964 = vmatprep.subr.bf16.mxu0 %v271
    %965 = vmatpush1.bf16.msra.mxu0 %v270
    %966 = vmatprep.subr.bf16.mxu0 %v275
    %967 = vmatpush1.bf16.msra.mxu0 %v274
    %968 = vmatprep.subr.bf16.mxu0 %v279
    %969 = vmatpush1.bf16.msra.mxu0 %v278
    %970 = vmatprep.subr.bf16.mxu0 %v283
    %971 = vmatpush1.bf16.msra.mxu0 %v282
    %972 = vmatprep.subr.bf16.mxu0 %v287
    %973 = vmatpush1.bf16.msra.mxu0 %v286
    %974 = vmatprep.subr.bf16.mxu0 0
    %975 = vmatpush1.bf16.msra.mxu0 0
    %976 = vmatprep.subr.bf16.mxu0 0
    %977 = vmatpush1.bf16.msra.mxu0 0
    %978 = vmatprep.subr.bf16.mxu0 0
    %979 = vmatpush1.bf16.msra.mxu0 0
    %980 = vmatprep.subr.bf16.mxu0 0
    %981 = vmatpush1.bf16.msra.mxu0 0
    %982 = vmatprep.subr.bf16.mxu0 0
    %983 = vmatpush1.bf16.msra.mxu0 0
    %984 = vmatprep.subr.bf16.mxu0 0
    %985 = vmatpush1.bf16.msra.mxu0 0
    %986 = vmatprep.subr.bf16.mxu0 0
    %987 = vmatpush1.bf16.msra.mxu0 0
    %988 = vmatprep.subr.bf16.mxu0 0
    %989 = vmatpush1.bf16.msra.mxu0 0
    %990 = vmatprep.mubr.bf16.mxu0 0
    %991 = vmatmul.mubr.bf16.gmra.mrb[0].mxu0 %v916
    %v992 = vpop.f32.mrb[0].mxu0
    %v993 = vadd.f32 %v151, %v992
    %v994 = vpop.f32.mrb[0].mxu0
    %v995 = vadd.f32 %v155, %v994
    %v996 = vpop.f32.mrb[0].mxu0
    %v997 = vpop.f32.mrb[0].mxu0
    %998 = vdwg.mxu0
    %v999 = vxor.u32 %v952, 2147483648
    %v1000 = vmul.f32 %v999, 1.442695
    %v1001 = vpow.pop %v1000
    %v1002 = vadd.f32 %v1001, 1.0
    %v1003 = vrcp.pop %v1002
    %v1004 = vmul.f32 1.0, %v1003
    %v1005 = vxor.u32 %v954, 2147483648
    %v1006 = vmul.f32 %v1005, 1.442695
    %v1007 = vpow.pop %v1006
    %v1008 = vadd.f32 %v1007, 1.0
    %v1009 = vrcp.pop %v1008
    %v1010 = vmul.f32 1.0, %v1009
    %v1011 = vmul.f32 %v1004, %v995
    %v1012 = vadd.f32 %v993, %v1011
    %v1013 = vtanh.pop %v1012
    %v1014 = vsub.f32 1.0, %v1010
    %v1015 = vmul.f32 %v1014, %v1013
    %v1016 = vmul.f32 %v1010, %v809
    %v1017 = vadd.f32 %v1015, %v1016
    %v1018 = vadd.f32 %v1017, %v912
    %v1019 = vpack.c.bf16 %v1018, %v1018
    %1020 = vmatprep.subr.bf16.mxu0 %v541
    %1021 = vmatpush1.bf16.msra.mxu0 %v540
    %1022 = vmatprep.subr.bf16.mxu0 %v545
    %1023 = vmatpush1.bf16.msra.mxu0 %v544
    %1024 = vmatprep.subr.bf16.mxu0 %v549
    %1025 = vmatpush1.bf16.msra.mxu0 %v548
    %1026 = vmatprep.subr.bf16.mxu0 %v553
    %1027 = vmatpush1.bf16.msra.mxu0 %v552
    %1028 = vmatprep.subr.bf16.mxu0 %v557
    %1029 = vmatpush1.bf16.msra.mxu0 %v556
    %1030 = vmatprep.subr.bf16.mxu0 %v561
    %1031 = vmatpush1.bf16.msra.mxu0 %v560
    %1032 = vmatprep.subr.bf16.mxu0 %v565
    %1033 = vmatpush1.bf16.msra.mxu0 %v564
    %1034 = vmatprep.subr.bf16.mxu0 %v569
    %1035 = vmatpush1.bf16.msra.mxu0 %v568
    %1036 = vmatprep.subr.bf16.mxu0 0
    %1037 = vmatpush1.bf16.msra.mxu0 0
    %1038 = vmatprep.subr.bf16.mxu0 0
    %1039 = vmatpush1.bf16.msra.mxu0 0
    %1040 = vmatprep.subr.bf16.mxu0 0
    %1041 = vmatpush1.bf16.msra.mxu0 0
    %1042 = vmatprep.subr.bf16.mxu0 0
    %1043 = vmatpush1.bf16.msra.mxu0 0
    %1044 = vmatprep.subr.bf16.mxu0 0
    %1045 = vmatpush1.bf16.msra.mxu0 0
    %1046 = vmatprep.subr.bf16.mxu0 0
    %1047 = vmatpush1.bf16.msra.mxu0 0
    %1048 = vmatprep.subr.bf16.mxu0 0
    %1049 = vmatpush1.bf16.msra.mxu0 0
    %1050 = vmatprep.subr.bf16.mxu0 0
    %1051 = vmatpush1.bf16.msra.mxu0 0
    %1052 = vmatprep.mubr.bf16.mxu0 0
    %1053 = vmatmul.mubr.bf16.gmra.mrb[0].mxu0 %v1019
    %v1054 = vpop.f32.mrb[0].mxu0
    %v1055 = vadd.f32 %v427, %v1054
    %v1056 = vpop.f32.mrb[0].mxu0
    %v1057 = vadd.f32 %v431, %v1056
    %v1058 = vpop.f32.mrb[0].mxu0
    %v1059 = vpop.f32.mrb[0].mxu0
    %1060 = vdwg.mxu0
    %1061 = vmatprep.subr.bf16.mxu0 %v543
    %1062 = vmatpush1.bf16.msra.mxu0 %v542
    %1063 = vmatprep.subr.bf16.mxu0 %v547
    %1064 = vmatpush1.bf16.msra.mxu0 %v546
    %1065 = vmatprep.subr.bf16.mxu0 %v551
    %1066 = vmatpush1.bf16.msra.mxu0 %v550
    %1067 = vmatprep.subr.bf16.mxu0 %v555
    %1068 = vmatpush1.bf16.msra.mxu0 %v554
    %1069 = vmatprep.subr.bf16.mxu0 %v559
    %1070 = vmatpush1.bf16.msra.mxu0 %v558
    %1071 = vmatprep.subr.bf16.mxu0 %v563
    %1072 = vmatpush1.bf16.msra.mxu0 %v562
    %1073 = vmatprep.subr.bf16.mxu0 %v567
    %1074 = vmatpush1.bf16.msra.mxu0 %v566
    %1075 = vmatprep.subr.bf16.mxu0 %v571
    %1076 = vmatpush1.bf16.msra.mxu0 %v570
    %1077 = vmatprep.subr.bf16.mxu0 0
    %1078 = vmatpush1.bf16.msra.mxu0 0
    %1079 = vmatprep.subr.bf16.mxu0 0
    %1080 = vmatpush1.bf16.msra.mxu0 0
    %1081 = vmatprep.subr.bf16.mxu0 0
    %1082 = vmatpush1.bf16.msra.mxu0 0
    %1083 = vmatprep.subr.bf16.mxu0 0
    %1084 = vmatpush1.bf16.msra.mxu0 0
    %1085 = vmatprep.subr.bf16.mxu0 0
    %1086 = vmatpush1.bf16.msra.mxu0 0
    %1087 = vmatprep.subr.bf16.mxu0 0
    %1088 = vmatpush1.bf16.msra.mxu0 0
    %1089 = vmatprep.subr.bf16.mxu0 0
    %1090 = vmatpush1.bf16.msra.mxu0 0
    %1091 = vmatprep.subr.bf16.mxu0 0
    %1092 = vmatpush1.bf16.msra.mxu0 0
    %1093 = vmatprep.mubr.bf16.mxu0 0
    %1094 = vmatmul.mubr.bf16.gmra.mrb[0].mxu0 %v1019
    %v1095 = vpop.f32.mrb[0].mxu0
    %v1096 = vadd.f32 %v435, %v1095
    %v1097 = vpop.f32.mrb[0].mxu0
    %v1098 = vadd.f32 %v439, %v1097
    %v1099 = vpop.f32.mrb[0].mxu0
    %v1100 = vpop.f32.mrb[0].mxu0
    %1101 = vdwg.mxu0
    %v1102 = vxor.u32 %v1055, 2147483648
    %v1103 = vmul.f32 %v1102, 1.442695
    %v1104 = vpow.pop %v1103
    %v1105 = vadd.f32 %v1104, 1.0
    %v1106 = vrcp.pop %v1105
    %v1107 = vmul.f32 1.0, %v1106
    %v1108 = vxor.u32 %v1057, 2147483648
    %v1109 = vmul.f32 %v1108, 1.442695
    %v1110 = vpow.pop %v1109
    %v1111 = vadd.f32 %v1110, 1.0
    %v1112 = vrcp.pop %v1111
    %v1113 = vmul.f32 1.0, %v1112
    %v1114 = vmul.f32 %v1107, %v1098
    %v1115 = vadd.f32 %v1096, %v1114
    %v1116 = vtanh.pop %v1115
    %v1117 = vsub.f32 1.0, %v1113
    %v1118 = vmul.f32 %v1117, %v1116
    %v1119 = vmul.f32 %v1113, %v912
    %v1120 = vadd.f32 %v1118, %v1119
    %s1121 = scalar_lea.vmem [#allocation3], 6
    %v1122 = vld [vmem:[%s1121] sm:$0x3]
    %v1123 = vadd.f32 %v1122, %v1017
    %v1124 = vpack.c.bf16 %v1123, %v1123
    %1125 = vmatprep.subr.bf16.mxu0 %v257
    %1126 = vmatpush1.bf16.msra.mxu0 %v256
    %1127 = vmatprep.subr.bf16.mxu0 %v261
    %1128 = vmatpush1.bf16.msra.mxu0 %v260
    %1129 = vmatprep.subr.bf16.mxu0 %v265
    %1130 = vmatpush1.bf16.msra.mxu0 %v264
    %1131 = vmatprep.subr.bf16.mxu0 %v269
    %1132 = vmatpush1.bf16.msra.mxu0 %v268
    %1133 = vmatprep.subr.bf16.mxu0 %v273
    %1134 = vmatpush1.bf16.msra.mxu0 %v272
    %1135 = vmatprep.subr.bf16.mxu0 %v277
    %1136 = vmatpush1.bf16.msra.mxu0 %v276
    %1137 = vmatprep.subr.bf16.mxu0 %v281
    %1138 = vmatpush1.bf16.msra.mxu0 %v280
    %1139 = vmatprep.subr.bf16.mxu0 %v285
    %1140 = vmatpush1.bf16.msra.mxu0 %v284
    %1141 = vmatprep.subr.bf16.mxu0 0
    %1142 = vmatpush1.bf16.msra.mxu0 0
    %1143 = vmatprep.subr.bf16.mxu0 0
    %1144 = vmatpush1.bf16.msra.mxu0 0
    %1145 = vmatprep.subr.bf16.mxu0 0
    %1146 = vmatpush1.bf16.msra.mxu0 0
    %1147 = vmatprep.subr.bf16.mxu0 0
    %1148 = vmatpush1.bf16.msra.mxu0 0
    %1149 = vmatprep.subr.bf16.mxu0 0
    %1150 = vmatpush1.bf16.msra.mxu0 0
    %1151 = vmatprep.subr.bf16.mxu0 0
    %1152 = vmatpush1.bf16.msra.mxu0 0
    %1153 = vmatprep.subr.bf16.mxu0 0
    %1154 = vmatpush1.bf16.msra.mxu0 0
    %1155 = vmatprep.subr.bf16.mxu0 0
    %1156 = vmatpush1.bf16.msra.mxu0 0
    %1157 = vmatprep.mubr.bf16.mxu0 0
    %1158 = vmatmul.mubr.bf16.gmra.mrb[0].mxu0 %v1124
    %v1159 = vpop.f32.mrb[0].mxu0
    %v1160 = vadd.f32 %v143, %v1159
    %v1161 = vpop.f32.mrb[0].mxu0
    %v1162 = vadd.f32 %v147, %v1161
    %v1163 = vpop.f32.mrb[0].mxu0
    %v1164 = vpop.f32.mrb[0].mxu0
    %1165 = vdwg.mxu0
    %1166 = vmatprep.subr.bf16.mxu0 %v259
    %1167 = vmatpush1.bf16.msra.mxu0 %v258
    %1168 = vmatprep.subr.bf16.mxu0 %v263
    %1169 = vmatpush1.bf16.msra.mxu0 %v262
    %1170 = vmatprep.subr.bf16.mxu0 %v267
    %1171 = vmatpush1.bf16.msra.mxu0 %v266
    %1172 = vmatprep.subr.bf16.mxu0 %v271
    %1173 = vmatpush1.bf16.msra.mxu0 %v270
    %1174 = vmatprep.subr.bf16.mxu0 %v275
    %1175 = vmatpush1.bf16.msra.mxu0 %v274
    %1176 = vmatprep.subr.bf16.mxu0 %v279
    %1177 = vmatpush1.bf16.msra.mxu0 %v278
    %1178 = vmatprep.subr.bf16.mxu0 %v283
    %1179 = vmatpush1.bf16.msra.mxu0 %v282
    %1180 = vmatprep.subr.bf16.mxu0 %v287
    %1181 = vmatpush1.bf16.msra.mxu0 %v286
    %1182 = vmatprep.subr.bf16.mxu0 0
    %1183 = vmatpush1.bf16.msra.mxu0 0
    %1184 = vmatprep.subr.bf16.mxu0 0
    %1185 = vmatpush1.bf16.msra.mxu0 0
    %1186 = vmatprep.subr.bf16.mxu0 0
    %1187 = vmatpush1.bf16.msra.mxu0 0
    %1188 = vmatprep.subr.bf16.mxu0 0
    %1189 = vmatpush1.bf16.msra.mxu0 0
    %1190 = vmatprep.subr.bf16.mxu0 0
    %1191 = vmatpush1.bf16.msra.mxu0 0
    %1192 = vmatprep.subr.bf16.mxu0 0
    %1193 = vmatpush1.bf16.msra.mxu0 0
    %1194 = vmatprep.subr.bf16.mxu0 0
    %1195 = vmatpush1.bf16.msra.mxu0 0
    %1196 = vmatprep.subr.bf16.mxu0 0
    %1197 = vmatpush1.bf16.msra.mxu0 0
    %1198 = vmatprep.mubr.bf16.mxu0 0
    %1199 = vmatmul.mubr.bf16.gmra.mrb[0].mxu0 %v1124
    %v1200 = vpop.f32.mrb[0].mxu0
    %v1201 = vadd.f32 %v151, %v1200
    %v1202 = vpop.f32.mrb[0].mxu0
    %v1203 = vadd.f32 %v155, %v1202
    %v1204 = vpop.f32.mrb[0].mxu0
    %v1205 = vpop.f32.mrb[0].mxu0
    %1206 = vdwg.mxu0
    %v1207 = vxor.u32 %v1160, 2147483648
    %v1208 = vmul.f32 %v1207, 1.442695
    %v1209 = vpow.pop %v1208
    %v1210 = vadd.f32 %v1209, 1.0
    %v1211 = vrcp.pop %v1210
    %v1212 = vmul.f32 1.0, %v1211
    %v1213 = vxor.u32 %v1162, 2147483648
    %v1214 = vmul.f32 %v1213, 1.442695
    %v1215 = vpow.pop %v1214
    %v1216 = vadd.f32 %v1215, 1.0
    %v1217 = vrcp.pop %v1216
    %v1218 = vmul.f32 1.0, %v1217
    %v1219 = vmul.f32 %v1212, %v1203
    %v1220 = vadd.f32 %v1201, %v1219
    %v1221 = vtanh.pop %v1220
    %v1222 = vsub.f32 1.0, %v1218
    %v1223 = vmul.f32 %v1222, %v1221
    %v1224 = vmul.f32 %v1218, %v1017
    %v1225 = vadd.f32 %v1223, %v1224
    %v1226 = vadd.f32 %v1225, %v1120
    %v1227 = vpack.c.bf16 %v1226, %v1226
    %1228 = vmatprep.subr.bf16.mxu0 %v541
    %1229 = vmatpush1.bf16.msra.mxu0 %v540
    %1230 = vmatprep.subr.bf16.mxu0 %v545
    %1231 = vmatpush1.bf16.msra.mxu0 %v544
    %1232 = vmatprep.subr.bf16.mxu0 %v549
    %1233 = vmatpush1.bf16.msra.mxu0 %v548
    %1234 = vmatprep.subr.bf16.mxu0 %v553
    %1235 = vmatpush1.bf16.msra.mxu0 %v552
    %1236 = vmatprep.subr.bf16.mxu0 %v557
    %1237 = vmatpush1.bf16.msra.mxu0 %v556
    %1238 = vmatprep.subr.bf16.mxu0 %v561
    %1239 = vmatpush1.bf16.msra.mxu0 %v560
    %1240 = vmatprep.subr.bf16.mxu0 %v565
    %1241 = vmatpush1.bf16.msra.mxu0 %v564
    %1242 = vmatprep.subr.bf16.mxu0 %v569
    %1243 = vmatpush1.bf16.msra.mxu0 %v568
    %1244 = vmatprep.subr.bf16.mxu0 0
    %1245 = vmatpush1.bf16.msra.mxu0 0
    %1246 = vmatprep.subr.bf16.mxu0 0
    %1247 = vmatpush1.bf16.msra.mxu0 0
    %1248 = vmatprep.subr.bf16.mxu0 0
    %1249 = vmatpush1.bf16.msra.mxu0 0
    %1250 = vmatprep.subr.bf16.mxu0 0
    %1251 = vmatpush1.bf16.msra.mxu0 0
    %1252 = vmatprep.subr.bf16.mxu0 0
    %1253 = vmatpush1.bf16.msra.mxu0 0
    %1254 = vmatprep.subr.bf16.mxu0 0
    %1255 = vmatpush1.bf16.msra.mxu0 0
    %1256 = vmatprep.subr.bf16.mxu0 0
    %1257 = vmatpush1.bf16.msra.mxu0 0
    %1258 = vmatprep.subr.bf16.mxu0 0
    %1259 = vmatpush1.bf16.msra.mxu0 0
    %1260 = vmatprep.mubr.bf16.mxu0 0
    %1261 = vmatmul.mubr.bf16.gmra.mrb[0].mxu0 %v1227
    %v1262 = vpop.f32.mrb[0].mxu0
    %v1263 = vadd.f32 %v427, %v1262
    %v1264 = vpop.f32.mrb[0].mxu0
    %v1265 = vadd.f32 %v431, %v1264
    %v1266 = vpop.f32.mrb[0].mxu0
    %v1267 = vpop.f32.mrb[0].mxu0
    %1268 = vdwg.mxu0
    %1269 = vmatprep.subr.bf16.mxu0 %v543
    %1270 = vmatpush1.bf16.msra.mxu0 %v542
    %1271 = vmatprep.subr.bf16.mxu0 %v547
    %1272 = vmatpush1.bf16.msra.mxu0 %v546
    %1273 = vmatprep.subr.bf16.mxu0 %v551
    %1274 = vmatpush1.bf16.msra.mxu0 %v550
    %1275 = vmatprep.subr.bf16.mxu0 %v555
    %1276 = vmatpush1.bf16.msra.mxu0 %v554
    %1277 = vmatprep.subr.bf16.mxu0 %v559
    %1278 = vmatpush1.bf16.msra.mxu0 %v558
    %1279 = vmatprep.subr.bf16.mxu0 %v563
    %1280 = vmatpush1.bf16.msra.mxu0 %v562
    %1281 = vmatprep.subr.bf16.mxu0 %v567
    %1282 = vmatpush1.bf16.msra.mxu0 %v566
    %1283 = vmatprep.subr.bf16.mxu0 %v571
    %1284 = vmatpush1.bf16.msra.mxu0 %v570
    %1285 = vmatprep.subr.bf16.mxu0 0
    %1286 = vmatpush1.bf16.msra.mxu0 0
    %1287 = vmatprep.subr.bf16.mxu0 0
    %1288 = vmatpush1.bf16.msra.mxu0 0
    %1289 = vmatprep.subr.bf16.mxu0 0
    %1290 = vmatpush1.bf16.msra.mxu0 0
    %1291 = vmatprep.subr.bf16.mxu0 0
    %1292 = vmatpush1.bf16.msra.mxu0 0
    %1293 = vmatprep.subr.bf16.mxu0 0
    %1294 = vmatpush1.bf16.msra.mxu0 0
    %1295 = vmatprep.subr.bf16.mxu0 0
    %1296 = vmatpush1.bf16.msra.mxu0 0
    %1297 = vmatprep.subr.bf16.mxu0 0
    %1298 = vmatpush1.bf16.msra.mxu0 0
    %1299 = vmatprep.subr.bf16.mxu0 0
    %1300 = vmatpush1.bf16.msra.mxu0 0
    %1301 = vmatprep.mubr.bf16.mxu0 0
    %1302 = vmatmul.mubr.bf16.gmra.mrb[0].mxu0 %v1227
    %v1303 = vpop.f32.mrb[0].mxu0
    %v1304 = vadd.f32 %v435, %v1303
    %v1305 = vpop.f32.mrb[0].mxu0
    %v1306 = vadd.f32 %v439, %v1305
    %v1307 = vpop.f32.mrb[0].mxu0
    %v1308 = vpop.f32.mrb[0].mxu0
    %1309 = vdwg.mxu0
    %v1310 = vxor.u32 %v1263, 2147483648
    %v1311 = vmul.f32 %v1310, 1.442695
    %v1312 = vpow.pop %v1311
    %v1313 = vadd.f32 %v1312, 1.0
    %v1314 = vrcp.pop %v1313
    %v1315 = vmul.f32 1.0, %v1314
    %v1316 = vxor.u32 %v1265, 2147483648
    %v1317 = vmul.f32 %v1316, 1.442695
    %v1318 = vpow.pop %v1317
    %v1319 = vadd.f32 %v1318, 1.0
    %v1320 = vrcp.pop %v1319
    %v1321 = vmul.f32 1.0, %v1320
    %v1322 = vmul.f32 %v1315, %v1306
    %v1323 = vadd.f32 %v1304, %v1322
    %v1324 = vtanh.pop %v1323
    %v1325 = vsub.f32 1.0, %v1321
    %v1326 = vmul.f32 %v1325, %v1324
    %v1327 = vmul.f32 %v1321, %v1120
    %v1328 = vadd.f32 %v1326, %v1327
    %s1329 = scalar_lea.vmem [#allocation3], 8
    %v1330 = vld [vmem:[%s1329] sm:$0x3]
    %v1331 = vadd.f32 %v1330, %v1225
    %v1332 = vpack.c.bf16 %v1331, %v1331
    %1333 = vmatprep.subr.bf16.mxu0 %v257
    %1334 = vmatpush1.bf16.msra.mxu0 %v256
    %1335 = vmatprep.subr.bf16.mxu0 %v261
    %1336 = vmatpush1.bf16.msra.mxu0 %v260
    %1337 = vmatprep.subr.bf16.mxu0 %v265
    %1338 = vmatpush1.bf16.msra.mxu0 %v264
    %1339 = vmatprep.subr.bf16.mxu0 %v269
    %1340 = vmatpush1.bf16.msra.mxu0 %v268
    %1341 = vmatprep.subr.bf16.mxu0 %v273
    %1342 = vmatpush1.bf16.msra.mxu0 %v272
    %1343 = vmatprep.subr.bf16.mxu0 %v277
    %1344 = vmatpush1.bf16.msra.mxu0 %v276
    %1345 = vmatprep.subr.bf16.mxu0 %v281
    %1346 = vmatpush1.bf16.msra.mxu0 %v280
    %1347 = vmatprep.subr.bf16.mxu0 %v285
    %1348 = vmatpush1.bf16.msra.mxu0 %v284
    %1349 = vmatprep.subr.bf16.mxu0 0
    %1350 = vmatpush1.bf16.msra.mxu0 0
    %1351 = vmatprep.subr.bf16.mxu0 0
    %1352 = vmatpush1.bf16.msra.mxu0 0
    %1353 = vmatprep.subr.bf16.mxu0 0
    %1354 = vmatpush1.bf16.msra.mxu0 0
    %1355 = vmatprep.subr.bf16.mxu0 0
    %1356 = vmatpush1.bf16.msra.mxu0 0
    %1357 = vmatprep.subr.bf16.mxu0 0
    %1358 = vmatpush1.bf16.msra.mxu0 0
    %1359 = vmatprep.subr.bf16.mxu0 0
    %1360 = vmatpush1.bf16.msra.mxu0 0
    %1361 = vmatprep.subr.bf16.mxu0 0
    %1362 = vmatpush1.bf16.msra.mxu0 0
    %1363 = vmatprep.subr.bf16.mxu0 0
    %1364 = vmatpush1.bf16.msra.mxu0 0
    %1365 = vmatprep.mubr.bf16.mxu0 0
    %1366 = vmatmul.mubr.bf16.gmra.mrb[0].mxu0 %v1332
    %v1367 = vpop.f32.mrb[0].mxu0
    %v1368 = vadd.f32 %v143, %v1367
    %v1369 = vpop.f32.mrb[0].mxu0
    %v1370 = vadd.f32 %v147, %v1369
    %v1371 = vpop.f32.mrb[0].mxu0
    %v1372 = vpop.f32.mrb[0].mxu0
    %1373 = vdwg.mxu0
    %1374 = vmatprep.subr.bf16.mxu0 %v259
    %1375 = vmatpush1.bf16.msra.mxu0 %v258
    %1376 = vmatprep.subr.bf16.mxu0 %v263
    %1377 = vmatpush1.bf16.msra.mxu0 %v262
    %1378 = vmatprep.subr.bf16.mxu0 %v267
    %1379 = vmatpush1.bf16.msra.mxu0 %v266
    %1380 = vmatprep.subr.bf16.mxu0 %v271
    %1381 = vmatpush1.bf16.msra.mxu0 %v270
    %1382 = vmatprep.subr.bf16.mxu0 %v275
    %1383 = vmatpush1.bf16.msra.mxu0 %v274
    %1384 = vmatprep.subr.bf16.mxu0 %v279
    %1385 = vmatpush1.bf16.msra.mxu0 %v278
    %1386 = vmatprep.subr.bf16.mxu0 %v283
    %1387 = vmatpush1.bf16.msra.mxu0 %v282
    %1388 = vmatprep.subr.bf16.mxu0 %v287
    %1389 = vmatpush1.bf16.msra.mxu0 %v286
    %1390 = vmatprep.subr.bf16.mxu0 0
    %1391 = vmatpush1.bf16.msra.mxu0 0
    %1392 = vmatprep.subr.bf16.mxu0 0
    %1393 = vmatpush1.bf16.msra.mxu0 0
    %1394 = vmatprep.subr.bf16.mxu0 0
    %1395 = vmatpush1.bf16.msra.mxu0 0
    %1396 = vmatprep.subr.bf16.mxu0 0
    %1397 = vmatpush1.bf16.msra.mxu0 0
    %1398 = vmatprep.subr.bf16.mxu0 0
    %1399 = vmatpush1.bf16.msra.mxu0 0
    %1400 = vmatprep.subr.bf16.mxu0 0
    %1401 = vmatpush1.bf16.msra.mxu0 0
    %1402 = vmatprep.subr.bf16.mxu0 0
    %1403 = vmatpush1.bf16.msra.mxu0 0
    %1404 = vmatprep.subr.bf16.mxu0 0
    %1405 = vmatpush1.bf16.msra.mxu0 0
    %1406 = vmatprep.mubr.bf16.mxu0 0
    %1407 = vmatmul.mubr.bf16.gmra.mrb[0].mxu0 %v1332
    %v1408 = vpop.f32.mrb[0].mxu0
    %v1409 = vadd.f32 %v151, %v1408
    %v1410 = vpop.f32.mrb[0].mxu0
    %v1411 = vadd.f32 %v155, %v1410
    %v1412 = vpop.f32.mrb[0].mxu0
    %v1413 = vpop.f32.mrb[0].mxu0
    %1414 = vdwg.mxu0
    %v1415 = vxor.u32 %v1368, 2147483648
    %v1416 = vmul.f32 %v1415, 1.442695
    %v1417 = vpow.pop %v1416
    %v1418 = vadd.f32 %v1417, 1.0
    %v1419 = vrcp.pop %v1418
    %v1420 = vmul.f32 1.0, %v1419
    %v1421 = vxor.u32 %v1370, 2147483648
    %v1422 = vmul.f32 %v1421, 1.442695
    %v1423 = vpow.pop %v1422
    %v1424 = vadd.f32 %v1423, 1.0
    %v1425 = vrcp.pop %v1424
    %v1426 = vmul.f32 1.0, %v1425
    %v1427 = vmul.f32 %v1420, %v1411
    %v1428 = vadd.f32 %v1409, %v1427
    %v1429 = vtanh.pop %v1428
    %v1430 = vsub.f32 1.0, %v1426
    %v1431 = vmul.f32 %v1430, %v1429
    %v1432 = vmul.f32 %v1426, %v1225
    %v1433 = vadd.f32 %v1431, %v1432
    %v1434 = vadd.f32 %v1433, %v1328
    %v1435 = vpack.c.bf16 %v1434, %v1434
    %1436 = vmatprep.subr.bf16.mxu0 %v541
    %1437 = vmatpush1.bf16.msra.mxu0 %v540
    %1438 = vmatprep.subr.bf16.mxu0 %v545
    %1439 = vmatpush1.bf16.msra.mxu0 %v544
    %1440 = vmatprep.subr.bf16.mxu0 %v549
    %1441 = vmatpush1.bf16.msra.mxu0 %v548
    %1442 = vmatprep.subr.bf16.mxu0 %v553
    %1443 = vmatpush1.bf16.msra.mxu0 %v552
    %1444 = vmatprep.subr.bf16.mxu0 %v557
    %1445 = vmatpush1.bf16.msra.mxu0 %v556
    %1446 = vmatprep.subr.bf16.mxu0 %v561
    %1447 = vmatpush1.bf16.msra.mxu0 %v560
    %1448 = vmatprep.subr.bf16.mxu0 %v565
    %1449 = vmatpush1.bf16.msra.mxu0 %v564
    %1450 = vmatprep.subr.bf16.mxu0 %v569
    %1451 = vmatpush1.bf16.msra.mxu0 %v568
    %1452 = vmatprep.subr.bf16.mxu0 0
    %1453 = vmatpush1.bf16.msra.mxu0 0
    %1454 = vmatprep.subr.bf16.mxu0 0
    %1455 = vmatpush1.bf16.msra.mxu0 0
    %1456 = vmatprep.subr.bf16.mxu0 0
    %1457 = vmatpush1.bf16.msra.mxu0 0
    %1458 = vmatprep.subr.bf16.mxu0 0
    %1459 = vmatpush1.bf16.msra.mxu0 0
    %1460 = vmatprep.subr.bf16.mxu0 0
    %1461 = vmatpush1.bf16.msra.mxu0 0
    %1462 = vmatprep.subr.bf16.mxu0 0
    %1463 = vmatpush1.bf16.msra.mxu0 0
    %1464 = vmatprep.subr.bf16.mxu0 0
    %1465 = vmatpush1.bf16.msra.mxu0 0
    %1466 = vmatprep.subr.bf16.mxu0 0
    %1467 = vmatpush1.bf16.msra.mxu0 0
    %1468 = vmatprep.mubr.bf16.mxu0 0
    %1469 = vmatmul.mubr.bf16.gmra.mrb[0].mxu0 %v1435
    %v1470 = vpop.f32.mrb[0].mxu0
    %v1471 = vadd.f32 %v427, %v1470
    %v1472 = vpop.f32.mrb[0].mxu0
    %v1473 = vadd.f32 %v431, %v1472
    %v1474 = vpop.f32.mrb[0].mxu0
    %v1475 = vpop.f32.mrb[0].mxu0
    %1476 = vdwg.mxu0
    %1477 = vmatprep.subr.bf16.mxu0 %v543
    %1478 = vmatpush1.bf16.msra.mxu0 %v542
    %1479 = vmatprep.subr.bf16.mxu0 %v547
    %1480 = vmatpush1.bf16.msra.mxu0 %v546
    %1481 = vmatprep.subr.bf16.mxu0 %v551
    %1482 = vmatpush1.bf16.msra.mxu0 %v550
    %1483 = vmatprep.subr.bf16.mxu0 %v555
    %1484 = vmatpush1.bf16.msra.mxu0 %v554
    %1485 = vmatprep.subr.bf16.mxu0 %v559
    %1486 = vmatpush1.bf16.msra.mxu0 %v558
    %1487 = vmatprep.subr.bf16.mxu0 %v563
    %1488 = vmatpush1.bf16.msra.mxu0 %v562
    %1489 = vmatprep.subr.bf16.mxu0 %v567
    %1490 = vmatpush1.bf16.msra.mxu0 %v566
    %1491 = vmatprep.subr.bf16.mxu0 %v571
    %1492 = vmatpush1.bf16.msra.mxu0 %v570
    %1493 = vmatprep.subr.bf16.mxu0 0
    %1494 = vmatpush1.bf16.msra.mxu0 0
    %1495 = vmatprep.subr.bf16.mxu0 0
    %1496 = vmatpush1.bf16.msra.mxu0 0
    %1497 = vmatprep.subr.bf16.mxu0 0
    %1498 = vmatpush1.bf16.msra.mxu0 0
    %1499 = vmatprep.subr.bf16.mxu0 0
    %1500 = vmatpush1.bf16.msra.mxu0 0
    %1501 = vmatprep.subr.bf16.mxu0 0
    %1502 = vmatpush1.bf16.msra.mxu0 0
    %1503 = vmatprep.subr.bf16.mxu0 0
    %1504 = vmatpush1.bf16.msra.mxu0 0
    %1505 = vmatprep.subr.bf16.mxu0 0
    %1506 = vmatpush1.bf16.msra.mxu0 0
    %1507 = vmatprep.subr.bf16.mxu0 0
    %1508 = vmatpush1.bf16.msra.mxu0 0
    %1509 = vmatprep.mubr.bf16.mxu0 0
    %1510 = vmatmul.mubr.bf16.gmra.mrb[0].mxu0 %v1435
    %v1511 = vpop.f32.mrb[0].mxu0
    %v1512 = vadd.f32 %v435, %v1511
    %v1513 = vpop.f32.mrb[0].mxu0
    %v1514 = vadd.f32 %v439, %v1513
    %v1515 = vpop.f32.mrb[0].mxu0
    %v1516 = vpop.f32.mrb[0].mxu0
    %1517 = vdwg.mxu0
    %v1518 = vxor.u32 %v1471, 2147483648
    %v1519 = vmul.f32 %v1518, 1.442695
    %v1520 = vpow.pop %v1519
    %v1521 = vadd.f32 %v1520, 1.0
    %v1522 = vrcp.pop %v1521
    %v1523 = vmul.f32 1.0, %v1522
    %v1524 = vxor.u32 %v1473, 2147483648
    %v1525 = vmul.f32 %v1524, 1.442695
    %v1526 = vpow.pop %v1525
    %v1527 = vadd.f32 %v1526, 1.0
    %v1528 = vrcp.pop %v1527
    %v1529 = vmul.f32 1.0, %v1528
    %v1530 = vmul.f32 %v1523, %v1514
    %v1531 = vadd.f32 %v1512, %v1530
    %v1532 = vtanh.pop %v1531
    %v1533 = vsub.f32 1.0, %v1529
    %v1534 = vmul.f32 %v1533, %v1532
    %v1535 = vmul.f32 %v1529, %v1328
    %v1536 = vadd.f32 %v1534, %v1535
    %s1537 = scalar_lea.vmem [#allocation3], 10
    %v1538 = vld [vmem:[%s1537] sm:$0x3]
    %v1539 = vadd.f32 %v1538, %v1433
    %v1540 = vpack.c.bf16 %v1539, %v1539
    %1541 = vmatprep.subr.bf16.mxu0 %v257
    %1542 = vmatpush1.bf16.msra.mxu0 %v256
    %1543 = vmatprep.subr.bf16.mxu0 %v261
    %1544 = vmatpush1.bf16.msra.mxu0 %v260
    %1545 = vmatprep.subr.bf16.mxu0 %v265
    %1546 = vmatpush1.bf16.msra.mxu0 %v264
    %1547 = vmatprep.subr.bf16.mxu0 %v269
    %1548 = vmatpush1.bf16.msra.mxu0 %v268
    %1549 = vmatprep.subr.bf16.mxu0 %v273
    %1550 = vmatpush1.bf16.msra.mxu0 %v272
    %1551 = vmatprep.subr.bf16.mxu0 %v277
    %1552 = vmatpush1.bf16.msra.mxu0 %v276
    %1553 = vmatprep.subr.bf16.mxu0 %v281
    %1554 = vmatpush1.bf16.msra.mxu0 %v280
    %1555 = vmatprep.subr.bf16.mxu0 %v285
    %1556 = vmatpush1.bf16.msra.mxu0 %v284
    %1557 = vmatprep.subr.bf16.mxu0 0
    %1558 = vmatpush1.bf16.msra.mxu0 0
    %1559 = vmatprep.subr.bf16.mxu0 0
    %1560 = vmatpush1.bf16.msra.mxu0 0
    %1561 = vmatprep.subr.bf16.mxu0 0
    %1562 = vmatpush1.bf16.msra.mxu0 0
    %1563 = vmatprep.subr.bf16.mxu0 0
    %1564 = vmatpush1.bf16.msra.mxu0 0
    %1565 = vmatprep.subr.bf16.mxu0 0
    %1566 = vmatpush1.bf16.msra.mxu0 0
    %1567 = vmatprep.subr.bf16.mxu0 0
    %1568 = vmatpush1.bf16.msra.mxu0 0
    %1569 = vmatprep.subr.bf16.mxu0 0
    %1570 = vmatpush1.bf16.msra.mxu0 0
    %1571 = vmatprep.subr.bf16.mxu0 0
    %1572 = vmatpush1.bf16.msra.mxu0 0
    %1573 = vmatprep.mubr.bf16.mxu0 0
    %1574 = vmatmul.mubr.bf16.gmra.mrb[0].mxu0 %v1540
    %v1575 = vpop.f32.mrb[0].mxu0
    %v1576 = vadd.f32 %v143, %v1575
    %v1577 = vpop.f32.mrb[0].mxu0
    %v1578 = vadd.f32 %v147, %v1577
    %v1579 = vpop.f32.mrb[0].mxu0
    %v1580 = vpop.f32.mrb[0].mxu0
    %1581 = vdwg.mxu0
    %1582 = vmatprep.subr.bf16.mxu0 %v259
    %1583 = vmatpush1.bf16.msra.mxu0 %v258
    %1584 = vmatprep.subr.bf16.mxu0 %v263
    %1585 = vmatpush1.bf16.msra.mxu0 %v262
    %1586 = vmatprep.subr.bf16.mxu0 %v267
    %1587 = vmatpush1.bf16.msra.mxu0 %v266
    %1588 = vmatprep.subr.bf16.mxu0 %v271
    %1589 = vmatpush1.bf16.msra.mxu0 %v270
    %1590 = vmatprep.subr.bf16.mxu0 %v275
    %1591 = vmatpush1.bf16.msra.mxu0 %v274
    %1592 = vmatprep.subr.bf16.mxu0 %v279
    %1593 = vmatpush1.bf16.msra.mxu0 %v278
    %1594 = vmatprep.subr.bf16.mxu0 %v283
    %1595 = vmatpush1.bf16.msra.mxu0 %v282
    %1596 = vmatprep.subr.bf16.mxu0 %v287
    %1597 = vmatpush1.bf16.msra.mxu0 %v286
    %1598 = vmatprep.subr.bf16.mxu0 0
    %1599 = vmatpush1.bf16.msra.mxu0 0
    %1600 = vmatprep.subr.bf16.mxu0 0
    %1601 = vmatpush1.bf16.msra.mxu0 0
    %1602 = vmatprep.subr.bf16.mxu0 0
    %1603 = vmatpush1.bf16.msra.mxu0 0
    %1604 = vmatprep.subr.bf16.mxu0 0
    %1605 = vmatpush1.bf16.msra.mxu0 0
    %1606 = vmatprep.subr.bf16.mxu0 0
    %1607 = vmatpush1.bf16.msra.mxu0 0
    %1608 = vmatprep.subr.bf16.mxu0 0
    %1609 = vmatpush1.bf16.msra.mxu0 0
    %1610 = vmatprep.subr.bf16.mxu0 0
    %1611 = vmatpush1.bf16.msra.mxu0 0
    %1612 = vmatprep.subr.bf16.mxu0 0
    %1613 = vmatpush1.bf16.msra.mxu0 0
    %1614 = vmatprep.mubr.bf16.mxu0 0
    %1615 = vmatmul.mubr.bf16.gmra.mrb[0].mxu0 %v1540
    %v1616 = vpop.f32.mrb[0].mxu0
    %v1617 = vadd.f32 %v151, %v1616
    %v1618 = vpop.f32.mrb[0].mxu0
    %v1619 = vadd.f32 %v155, %v1618
    %v1620 = vpop.f32.mrb[0].mxu0
    %v1621 = vpop.f32.mrb[0].mxu0
    %1622 = vdwg.mxu0
    %v1623 = vxor.u32 %v1576, 2147483648
    %v1624 = vmul.f32 %v1623, 1.442695
    %v1625 = vpow.pop %v1624
    %v1626 = vadd.f32 %v1625, 1.0
    %v1627 = vrcp.pop %v1626
    %v1628 = vmul.f32 1.0, %v1627
    %v1629 = vxor.u32 %v1578, 2147483648
    %v1630 = vmul.f32 %v1629, 1.442695
    %v1631 = vpow.pop %v1630
    %v1632 = vadd.f32 %v1631, 1.0
    %v1633 = vrcp.pop %v1632
    %v1634 = vmul.f32 1.0, %v1633
    %v1635 = vmul.f32 %v1628, %v1619
    %v1636 = vadd.f32 %v1617, %v1635
    %v1637 = vtanh.pop %v1636
    %v1638 = vsub.f32 1.0, %v1634
    %v1639 = vmul.f32 %v1638, %v1637
    %v1640 = vmul.f32 %v1634, %v1433
    %v1641 = vadd.f32 %v1639, %v1640
    %v1642 = vadd.f32 %v1641, %v1536
    %v1643 = vpack.c.bf16 %v1642, %v1642
    %1644 = vmatprep.subr.bf16.mxu0 %v541
    %1645 = vmatpush1.bf16.msra.mxu0 %v540
    %1646 = vmatprep.subr.bf16.mxu0 %v545
    %1647 = vmatpush1.bf16.msra.mxu0 %v544
    %1648 = vmatprep.subr.bf16.mxu0 %v549
    %1649 = vmatpush1.bf16.msra.mxu0 %v548
    %1650 = vmatprep.subr.bf16.mxu0 %v553
    %1651 = vmatpush1.bf16.msra.mxu0 %v552
    %1652 = vmatprep.subr.bf16.mxu0 %v557
    %1653 = vmatpush1.bf16.msra.mxu0 %v556
    %1654 = vmatprep.subr.bf16.mxu0 %v561
    %1655 = vmatpush1.bf16.msra.mxu0 %v560
    %1656 = vmatprep.subr.bf16.mxu0 %v565
    %1657 = vmatpush1.bf16.msra.mxu0 %v564
    %1658 = vmatprep.subr.bf16.mxu0 %v569
    %1659 = vmatpush1.bf16.msra.mxu0 %v568
    %1660 = vmatprep.subr.bf16.mxu0 0
    %1661 = vmatpush1.bf16.msra.mxu0 0
    %1662 = vmatprep.subr.bf16.mxu0 0
    %1663 = vmatpush1.bf16.msra.mxu0 0
    %1664 = vmatprep.subr.bf16.mxu0 0
    %1665 = vmatpush1.bf16.msra.mxu0 0
    %1666 = vmatprep.subr.bf16.mxu0 0
    %1667 = vmatpush1.bf16.msra.mxu0 0
    %1668 = vmatprep.subr.bf16.mxu0 0
    %1669 = vmatpush1.bf16.msra.mxu0 0
    %1670 = vmatprep.subr.bf16.mxu0 0
    %1671 = vmatpush1.bf16.msra.mxu0 0
    %1672 = vmatprep.subr.bf16.mxu0 0
    %1673 = vmatpush1.bf16.msra.mxu0 0
    %1674 = vmatprep.subr.bf16.mxu0 0
    %1675 = vmatpush1.bf16.msra.mxu0 0
    %1676 = vmatprep.mubr.bf16.mxu0 0
    %1677 = vmatmul.mubr.bf16.gmra.mrb[0].mxu0 %v1643
    %v1678 = vpop.f32.mrb[0].mxu0
    %v1679 = vadd.f32 %v427, %v1678
    %v1680 = vpop.f32.mrb[0].mxu0
    %v1681 = vadd.f32 %v431, %v1680
    %v1682 = vpop.f32.mrb[0].mxu0
    %v1683 = vpop.f32.mrb[0].mxu0
    %1684 = vdwg.mxu0
    %1685 = vmatprep.subr.bf16.mxu0 %v543
    %1686 = vmatpush1.bf16.msra.mxu0 %v542
    %1687 = vmatprep.subr.bf16.mxu0 %v547
    %1688 = vmatpush1.bf16.msra.mxu0 %v546
    %1689 = vmatprep.subr.bf16.mxu0 %v551
    %1690 = vmatpush1.bf16.msra.mxu0 %v550
    %1691 = vmatprep.subr.bf16.mxu0 %v555
    %1692 = vmatpush1.bf16.msra.mxu0 %v554
    %1693 = vmatprep.subr.bf16.mxu0 %v559
    %1694 = vmatpush1.bf16.msra.mxu0 %v558
    %1695 = vmatprep.subr.bf16.mxu0 %v563
    %1696 = vmatpush1.bf16.msra.mxu0 %v562
    %1697 = vmatprep.subr.bf16.mxu0 %v567
    %1698 = vmatpush1.bf16.msra.mxu0 %v566
    %1699 = vmatprep.subr.bf16.mxu0 %v571
    %1700 = vmatpush1.bf16.msra.mxu0 %v570
    %1701 = vmatprep.subr.bf16.mxu0 0
    %1702 = vmatpush1.bf16.msra.mxu0 0
    %1703 = vmatprep.subr.bf16.mxu0 0
    %1704 = vmatpush1.bf16.msra.mxu0 0
    %1705 = vmatprep.subr.bf16.mxu0 0
    %1706 = vmatpush1.bf16.msra.mxu0 0
    %1707 = vmatprep.subr.bf16.mxu0 0
    %1708 = vmatpush1.bf16.msra.mxu0 0
    %1709 = vmatprep.subr.bf16.mxu0 0
    %1710 = vmatpush1.bf16.msra.mxu0 0
    %1711 = vmatprep.subr.bf16.mxu0 0
    %1712 = vmatpush1.bf16.msra.mxu0 0
    %1713 = vmatprep.subr.bf16.mxu0 0
    %1714 = vmatpush1.bf16.msra.mxu0 0
    %1715 = vmatprep.subr.bf16.mxu0 0
    %1716 = vmatpush1.bf16.msra.mxu0 0
    %1717 = vmatprep.mubr.bf16.mxu0 0
    %1718 = vmatmul.mubr.bf16.gmra.mrb[0].mxu0 %v1643
    %v1719 = vpop.f32.mrb[0].mxu0
    %v1720 = vadd.f32 %v435, %v1719
    %v1721 = vpop.f32.mrb[0].mxu0
    %v1722 = vadd.f32 %v439, %v1721
    %v1723 = vpop.f32.mrb[0].mxu0
    %v1724 = vpop.f32.mrb[0].mxu0
    %1725 = vdwg.mxu0
    %v1726 = vxor.u32 %v1679, 2147483648
    %v1727 = vmul.f32 %v1726, 1.442695
    %v1728 = vpow.pop %v1727
    %v1729 = vadd.f32 %v1728, 1.0
    %v1730 = vrcp.pop %v1729
    %v1731 = vmul.f32 1.0, %v1730
    %v1732 = vxor.u32 %v1681, 2147483648
    %v1733 = vmul.f32 %v1732, 1.442695
    %v1734 = vpow.pop %v1733
    %v1735 = vadd.f32 %v1734, 1.0
    %v1736 = vrcp.pop %v1735
    %v1737 = vmul.f32 1.0, %v1736
    %v1738 = vmul.f32 %v1731, %v1722
    %v1739 = vadd.f32 %v1720, %v1738
    %v1740 = vtanh.pop %v1739
    %v1741 = vsub.f32 1.0, %v1737
    %v1742 = vmul.f32 %v1741, %v1740
    %v1743 = vmul.f32 %v1737, %v1536
    %v1744 = vadd.f32 %v1742, %v1743
    %s1745 = scalar_lea.vmem [#allocation3], 12
    %v1746 = vld [vmem:[%s1745] sm:$0x3]
    %v1747 = vadd.f32 %v1746, %v1641
    %v1748 = vpack.c.bf16 %v1747, %v1747
    %1749 = vmatprep.subr.bf16.mxu0 %v257
    %1750 = vmatpush1.bf16.msra.mxu0 %v256
    %1751 = vmatprep.subr.bf16.mxu0 %v261
    %1752 = vmatpush1.bf16.msra.mxu0 %v260
    %1753 = vmatprep.subr.bf16.mxu0 %v265
    %1754 = vmatpush1.bf16.msra.mxu0 %v264
    %1755 = vmatprep.subr.bf16.mxu0 %v269
    %1756 = vmatpush1.bf16.msra.mxu0 %v268
    %1757 = vmatprep.subr.bf16.mxu0 %v273
    %1758 = vmatpush1.bf16.msra.mxu0 %v272
    %1759 = vmatprep.subr.bf16.mxu0 %v277
    %1760 = vmatpush1.bf16.msra.mxu0 %v276
    %1761 = vmatprep.subr.bf16.mxu0 %v281
    %1762 = vmatpush1.bf16.msra.mxu0 %v280
    %1763 = vmatprep.subr.bf16.mxu0 %v285
    %1764 = vmatpush1.bf16.msra.mxu0 %v284
    %1765 = vmatprep.subr.bf16.mxu0 0
    %1766 = vmatpush1.bf16.msra.mxu0 0
    %1767 = vmatprep.subr.bf16.mxu0 0
    %1768 = vmatpush1.bf16.msra.mxu0 0
    %1769 = vmatprep.subr.bf16.mxu0 0
    %1770 = vmatpush1.bf16.msra.mxu0 0
    %1771 = vmatprep.subr.bf16.mxu0 0
    %1772 = vmatpush1.bf16.msra.mxu0 0
    %1773 = vmatprep.subr.bf16.mxu0 0
    %1774 = vmatpush1.bf16.msra.mxu0 0
    %1775 = vmatprep.subr.bf16.mxu0 0
    %1776 = vmatpush1.bf16.msra.mxu0 0
    %1777 = vmatprep.subr.bf16.mxu0 0
    %1778 = vmatpush1.bf16.msra.mxu0 0
    %1779 = vmatprep.subr.bf16.mxu0 0
    %1780 = vmatpush1.bf16.msra.mxu0 0
    %1781 = vmatprep.mubr.bf16.mxu0 0
    %1782 = vmatmul.mubr.bf16.gmra.mrb[0].mxu0 %v1748
    %v1783 = vpop.f32.mrb[0].mxu0
    %v1784 = vadd.f32 %v143, %v1783
    %v1785 = vpop.f32.mrb[0].mxu0
    %v1786 = vadd.f32 %v147, %v1785
    %v1787 = vpop.f32.mrb[0].mxu0
    %v1788 = vpop.f32.mrb[0].mxu0
    %1789 = vdwg.mxu0
    %1790 = vmatprep.subr.bf16.mxu0 %v259
    %1791 = vmatpush1.bf16.msra.mxu0 %v258
    %1792 = vmatprep.subr.bf16.mxu0 %v263
    %1793 = vmatpush1.bf16.msra.mxu0 %v262
    %1794 = vmatprep.subr.bf16.mxu0 %v267
    %1795 = vmatpush1.bf16.msra.mxu0 %v266
    %1796 = vmatprep.subr.bf16.mxu0 %v271
    %1797 = vmatpush1.bf16.msra.mxu0 %v270
    %1798 = vmatprep.subr.bf16.mxu0 %v275
    %1799 = vmatpush1.bf16.msra.mxu0 %v274
    %1800 = vmatprep.subr.bf16.mxu0 %v279
    %1801 = vmatpush1.bf16.msra.mxu0 %v278
    %1802 = vmatprep.subr.bf16.mxu0 %v283
    %1803 = vmatpush1.bf16.msra.mxu0 %v282
    %1804 = vmatprep.subr.bf16.mxu0 %v287
    %1805 = vmatpush1.bf16.msra.mxu0 %v286
    %1806 = vmatprep.subr.bf16.mxu0 0
    %1807 = vmatpush1.bf16.msra.mxu0 0
    %1808 = vmatprep.subr.bf16.mxu0 0
    %1809 = vmatpush1.bf16.msra.mxu0 0
    %1810 = vmatprep.subr.bf16.mxu0 0
    %1811 = vmatpush1.bf16.msra.mxu0 0
    %1812 = vmatprep.subr.bf16.mxu0 0
    %1813 = vmatpush1.bf16.msra.mxu0 0
    %1814 = vmatprep.subr.bf16.mxu0 0
    %1815 = vmatpush1.bf16.msra.mxu0 0
    %1816 = vmatprep.subr.bf16.mxu0 0
    %1817 = vmatpush1.bf16.msra.mxu0 0
    %1818 = vmatprep.subr.bf16.mxu0 0
    %1819 = vmatpush1.bf16.msra.mxu0 0
    %1820 = vmatprep.subr.bf16.mxu0 0
    %1821 = vmatpush1.bf16.msra.mxu0 0
    %1822 = vmatprep.mubr.bf16.mxu0 0
    %1823 = vmatmul.mubr.bf16.gmra.mrb[0].mxu0 %v1748
    %v1824 = vpop.f32.mrb[0].mxu0
    %v1825 = vadd.f32 %v151, %v1824
    %v1826 = vpop.f32.mrb[0].mxu0
    %v1827 = vadd.f32 %v155, %v1826
    %v1828 = vpop.f32.mrb[0].mxu0
    %v1829 = vpop.f32.mrb[0].mxu0
    %1830 = vdwg.mxu0
    %v1831 = vxor.u32 %v1784, 2147483648
    %v1832 = vmul.f32 %v1831, 1.442695
    %v1833 = vpow.pop %v1832
    %v1834 = vadd.f32 %v1833, 1.0
    %v1835 = vrcp.pop %v1834
    %v1836 = vmul.f32 1.0, %v1835
    %v1837 = vxor.u32 %v1786, 2147483648
    %v1838 = vmul.f32 %v1837, 1.442695
    %v1839 = vpow.pop %v1838
    %v1840 = vadd.f32 %v1839, 1.0
    %v1841 = vrcp.pop %v1840
    %v1842 = vmul.f32 1.0, %v1841
    %v1843 = vmul.f32 %v1836, %v1827
    %v1844 = vadd.f32 %v1825, %v1843
    %v1845 = vtanh.pop %v1844
    %v1846 = vsub.f32 1.0, %v1842
    %v1847 = vmul.f32 %v1846, %v1845
    %v1848 = vmul.f32 %v1842, %v1641
    %v1849 = vadd.f32 %v1847, %v1848
    %v1850 = vadd.f32 %v1849, %v1744
    %v1851 = vpack.c.bf16 %v1850, %v1850
    %1852 = vmatprep.subr.bf16.mxu0 %v541
    %1853 = vmatpush1.bf16.msra.mxu0 %v540
    %1854 = vmatprep.subr.bf16.mxu0 %v545
    %1855 = vmatpush1.bf16.msra.mxu0 %v544
    %1856 = vmatprep.subr.bf16.mxu0 %v549
    %1857 = vmatpush1.bf16.msra.mxu0 %v548
    %1858 = vmatprep.subr.bf16.mxu0 %v553
    %1859 = vmatpush1.bf16.msra.mxu0 %v552
    %1860 = vmatprep.subr.bf16.mxu0 %v557
    %1861 = vmatpush1.bf16.msra.mxu0 %v556
    %1862 = vmatprep.subr.bf16.mxu0 %v561
    %1863 = vmatpush1.bf16.msra.mxu0 %v560
    %1864 = vmatprep.subr.bf16.mxu0 %v565
    %1865 = vmatpush1.bf16.msra.mxu0 %v564
    %1866 = vmatprep.subr.bf16.mxu0 %v569
    %1867 = vmatpush1.bf16.msra.mxu0 %v568
    %1868 = vmatprep.subr.bf16.mxu0 0
    %1869 = vmatpush1.bf16.msra.mxu0 0
    %1870 = vmatprep.subr.bf16.mxu0 0
    %1871 = vmatpush1.bf16.msra.mxu0 0
    %1872 = vmatprep.subr.bf16.mxu0 0
    %1873 = vmatpush1.bf16.msra.mxu0 0
    %1874 = vmatprep.subr.bf16.mxu0 0
    %1875 = vmatpush1.bf16.msra.mxu0 0
    %1876 = vmatprep.subr.bf16.mxu0 0
    %1877 = vmatpush1.bf16.msra.mxu0 0
    %1878 = vmatprep.subr.bf16.mxu0 0
    %1879 = vmatpush1.bf16.msra.mxu0 0
    %1880 = vmatprep.subr.bf16.mxu0 0
    %1881 = vmatpush1.bf16.msra.mxu0 0
    %1882 = vmatprep.subr.bf16.mxu0 0
    %1883 = vmatpush1.bf16.msra.mxu0 0
    %1884 = vmatprep.mubr.bf16.mxu0 0
    %1885 = vmatmul.mubr.bf16.gmra.mrb[0].mxu0 %v1851
    %v1886 = vpop.f32.mrb[0].mxu0
    %v1887 = vadd.f32 %v427, %v1886
    %v1888 = vpop.f32.mrb[0].mxu0
    %v1889 = vadd.f32 %v431, %v1888
    %v1890 = vpop.f32.mrb[0].mxu0
    %v1891 = vpop.f32.mrb[0].mxu0
    %1892 = vdwg.mxu0
    %1893 = vmatprep.subr.bf16.mxu0 %v543
    %1894 = vmatpush1.bf16.msra.mxu0 %v542
    %1895 = vmatprep.subr.bf16.mxu0 %v547
    %1896 = vmatpush1.bf16.msra.mxu0 %v546
    %1897 = vmatprep.subr.bf16.mxu0 %v551
    %1898 = vmatpush1.bf16.msra.mxu0 %v550
    %1899 = vmatprep.subr.bf16.mxu0 %v555
    %1900 = vmatpush1.bf16.msra.mxu0 %v554
    %1901 = vmatprep.subr.bf16.mxu0 %v559
    %1902 = vmatpush1.bf16.msra.mxu0 %v558
    %1903 = vmatprep.subr.bf16.mxu0 %v563
    %1904 = vmatpush1.bf16.msra.mxu0 %v562
    %1905 = vmatprep.subr.bf16.mxu0 %v567
    %1906 = vmatpush1.bf16.msra.mxu0 %v566
    %1907 = vmatprep.subr.bf16.mxu0 %v571
    %1908 = vmatpush1.bf16.msra.mxu0 %v570
    %1909 = vmatprep.subr.bf16.mxu0 0
    %1910 = vmatpush1.bf16.msra.mxu0 0
    %1911 = vmatprep.subr.bf16.mxu0 0
    %1912 = vmatpush1.bf16.msra.mxu0 0
    %1913 = vmatprep.subr.bf16.mxu0 0
    %1914 = vmatpush1.bf16.msra.mxu0 0
    %1915 = vmatprep.subr.bf16.mxu0 0
    %1916 = vmatpush1.bf16.msra.mxu0 0
    %1917 = vmatprep.subr.bf16.mxu0 0
    %1918 = vmatpush1.bf16.msra.mxu0 0
    %1919 = vmatprep.subr.bf16.mxu0 0
    %1920 = vmatpush1.bf16.msra.mxu0 0
    %1921 = vmatprep.subr.bf16.mxu0 0
    %1922 = vmatpush1.bf16.msra.mxu0 0
    %1923 = vmatprep.subr.bf16.mxu0 0
    %1924 = vmatpush1.bf16.msra.mxu0 0
    %1925 = vmatprep.mubr.bf16.mxu0 0
    %1926 = vmatmul.mubr.bf16.gmra.mrb[0].mxu0 %v1851
    %v1927 = vpop.f32.mrb[0].mxu0
    %v1928 = vadd.f32 %v435, %v1927
    %v1929 = vpop.f32.mrb[0].mxu0
    %v1930 = vadd.f32 %v439, %v1929
    %v1931 = vpop.f32.mrb[0].mxu0
    %v1932 = vpop.f32.mrb[0].mxu0
    %1933 = vdwg.mxu0
    %v1934 = vxor.u32 %v1887, 2147483648
    %v1935 = vmul.f32 %v1934, 1.442695
    %v1936 = vpow.pop %v1935
    %v1937 = vadd.f32 %v1936, 1.0
    %v1938 = vrcp.pop %v1937
    %v1939 = vmul.f32 1.0, %v1938
    %v1940 = vxor.u32 %v1889, 2147483648
    %v1941 = vmul.f32 %v1940, 1.442695
    %v1942 = vpow.pop %v1941
    %v1943 = vadd.f32 %v1942, 1.0
    %v1944 = vrcp.pop %v1943
    %v1945 = vmul.f32 1.0, %v1944
    %v1946 = vmul.f32 %v1939, %v1930
    %v1947 = vadd.f32 %v1928, %v1946
    %v1948 = vtanh.pop %v1947
    %v1949 = vsub.f32 1.0, %v1945
    %v1950 = vmul.f32 %v1949, %v1948
    %v1951 = vmul.f32 %v1945, %v1744
    %v1952 = vadd.f32 %v1950, %v1951
    %s1953 = scalar_lea.vmem [#allocation3], 14
    %v1954 = vld [vmem:[%s1953] sm:$0x3]
    %v1955 = vadd.f32 %v1954, %v1849
    %v1956 = vpack.c.bf16 %v1955, %v1955
    %1957 = vmatprep.subr.bf16.mxu0 %v257
    %1958 = vmatpush1.bf16.msra.mxu0 %v256
    %1959 = vmatprep.subr.bf16.mxu0 %v261
    %1960 = vmatpush1.bf16.msra.mxu0 %v260
    %1961 = vmatprep.subr.bf16.mxu0 %v265
    %1962 = vmatpush1.bf16.msra.mxu0 %v264
    %1963 = vmatprep.subr.bf16.mxu0 %v269
    %1964 = vmatpush1.bf16.msra.mxu0 %v268
    %1965 = vmatprep.subr.bf16.mxu0 %v273
    %1966 = vmatpush1.bf16.msra.mxu0 %v272
    %1967 = vmatprep.subr.bf16.mxu0 %v277
    %1968 = vmatpush1.bf16.msra.mxu0 %v276
    %1969 = vmatprep.subr.bf16.mxu0 %v281
    %1970 = vmatpush1.bf16.msra.mxu0 %v280
    %1971 = vmatprep.subr.bf16.mxu0 %v285
    %1972 = vmatpush1.bf16.msra.mxu0 %v284
    %1973 = vmatprep.subr.bf16.mxu0 0
    %1974 = vmatpush1.bf16.msra.mxu0 0
    %1975 = vmatprep.subr.bf16.mxu0 0
    %1976 = vmatpush1.bf16.msra.mxu0 0
    %1977 = vmatprep.subr.bf16.mxu0 0
    %1978 = vmatpush1.bf16.msra.mxu0 0
    %1979 = vmatprep.subr.bf16.mxu0 0
    %1980 = vmatpush1.bf16.msra.mxu0 0
    %1981 = vmatprep.subr.bf16.mxu0 0
    %1982 = vmatpush1.bf16.msra.mxu0 0
    %1983 = vmatprep.subr.bf16.mxu0 0
    %1984 = vmatpush1.bf16.msra.mxu0 0
    %1985 = vmatprep.subr.bf16.mxu0 0
    %1986 = vmatpush1.bf16.msra.mxu0 0
    %1987 = vmatprep.subr.bf16.mxu0 0
    %1988 = vmatpush1.bf16.msra.mxu0 0
    %1989 = vmatprep.mubr.bf16.mxu0 0
    %1990 = vmatmul.mubr.bf16.gmra.mrb[0].mxu0 %v1956
    %v1991 = vpop.f32.mrb[0].mxu0
    %v1992 = vadd.f32 %v143, %v1991
    %v1993 = vpop.f32.mrb[0].mxu0
    %v1994 = vadd.f32 %v147, %v1993
    %v1995 = vpop.f32.mrb[0].mxu0
    %v1996 = vpop.f32.mrb[0].mxu0
    %1997 = vdwg.mxu0
    %1998 = vmatprep.subr.bf16.mxu0 %v259
    %1999 = vmatpush1.bf16.msra.mxu0 %v258
    %2000 = vmatprep.subr.bf16.mxu0 %v263
    %2001 = vmatpush1.bf16.msra.mxu0 %v262
    %2002 = vmatprep.subr.bf16.mxu0 %v267
    %2003 = vmatpush1.bf16.msra.mxu0 %v266
    %2004 = vmatprep.subr.bf16.mxu0 %v271
    %2005 = vmatpush1.bf16.msra.mxu0 %v270
    %2006 = vmatprep.subr.bf16.mxu0 %v275
    %2007 = vmatpush1.bf16.msra.mxu0 %v274
    %2008 = vmatprep.subr.bf16.mxu0 %v279
    %2009 = vmatpush1.bf16.msra.mxu0 %v278
    %2010 = vmatprep.subr.bf16.mxu0 %v283
    %2011 = vmatpush1.bf16.msra.mxu0 %v282
    %2012 = vmatprep.subr.bf16.mxu0 %v287
    %2013 = vmatpush1.bf16.msra.mxu0 %v286
    %2014 = vmatprep.subr.bf16.mxu0 0
    %2015 = vmatpush1.bf16.msra.mxu0 0
    %2016 = vmatprep.subr.bf16.mxu0 0
    %2017 = vmatpush1.bf16.msra.mxu0 0
    %2018 = vmatprep.subr.bf16.mxu0 0
    %2019 = vmatpush1.bf16.msra.mxu0 0
    %2020 = vmatprep.subr.bf16.mxu0 0
    %2021 = vmatpush1.bf16.msra.mxu0 0
    %2022 = vmatprep.subr.bf16.mxu0 0
    %2023 = vmatpush1.bf16.msra.mxu0 0
    %2024 = vmatprep.subr.bf16.mxu0 0
    %2025 = vmatpush1.bf16.msra.mxu0 0
    %2026 = vmatprep.subr.bf16.mxu0 0
    %2027 = vmatpush1.bf16.msra.mxu0 0
    %2028 = vmatprep.subr.bf16.mxu0 0
    %2029 = vmatpush1.bf16.msra.mxu0 0
    %2030 = vmatprep.mubr.bf16.mxu0 0
    %2031 = vmatmul.mubr.bf16.gmra.mrb[0].mxu0 %v1956
    %v2032 = vpop.f32.mrb[0].mxu0
    %v2033 = vadd.f32 %v151, %v2032
    %v2034 = vpop.f32.mrb[0].mxu0
    %v2035 = vadd.f32 %v155, %v2034
    %v2036 = vpop.f32.mrb[0].mxu0
    %v2037 = vpop.f32.mrb[0].mxu0
    %2038 = vdwg.mxu0
    %v2039 = vxor.u32 %v1992, 2147483648
    %v2040 = vmul.f32 %v2039, 1.442695
    %v2041 = vpow.pop %v2040
    %v2042 = vadd.f32 %v2041, 1.0
    %v2043 = vrcp.pop %v2042
    %v2044 = vmul.f32 1.0, %v2043
    %v2045 = vxor.u32 %v1994, 2147483648
    %v2046 = vmul.f32 %v2045, 1.442695
    %v2047 = vpow.pop %v2046
    %v2048 = vadd.f32 %v2047, 1.0
    %v2049 = vrcp.pop %v2048
    %v2050 = vmul.f32 1.0, %v2049
    %v2051 = vmul.f32 %v2044, %v2035
    %v2052 = vadd.f32 %v2033, %v2051
    %v2053 = vtanh.pop %v2052
    %v2054 = vsub.f32 1.0, %v2050
    %v2055 = vmul.f32 %v2054, %v2053
    %v2056 = vmul.f32 %v2050, %v1849
    %v2057 = vadd.f32 %v2055, %v2056
    %v2058 = vadd.f32 %v2057, %v1952
    %v2059 = vpack.c.bf16 %v2058, %v2058
    %2060 = vmatprep.subr.bf16.mxu0 %v541
    %2061 = vmatpush1.bf16.msra.mxu0 %v540
    %2062 = vmatprep.subr.bf16.mxu0 %v545
    %2063 = vmatpush1.bf16.msra.mxu0 %v544
    %2064 = vmatprep.subr.bf16.mxu0 %v549
    %2065 = vmatpush1.bf16.msra.mxu0 %v548
    %2066 = vmatprep.subr.bf16.mxu0 %v553
    %2067 = vmatpush1.bf16.msra.mxu0 %v552
    %2068 = vmatprep.subr.bf16.mxu0 %v557
    %2069 = vmatpush1.bf16.msra.mxu0 %v556
    %2070 = vmatprep.subr.bf16.mxu0 %v561
    %2071 = vmatpush1.bf16.msra.mxu0 %v560
    %2072 = vmatprep.subr.bf16.mxu0 %v565
    %2073 = vmatpush1.bf16.msra.mxu0 %v564
    %2074 = vmatprep.subr.bf16.mxu0 %v569
    %2075 = vmatpush1.bf16.msra.mxu0 %v568
    %2076 = vmatprep.subr.bf16.mxu0 0
    %2077 = vmatpush1.bf16.msra.mxu0 0
    %2078 = vmatprep.subr.bf16.mxu0 0
    %2079 = vmatpush1.bf16.msra.mxu0 0
    %2080 = vmatprep.subr.bf16.mxu0 0
    %2081 = vmatpush1.bf16.msra.mxu0 0
    %2082 = vmatprep.subr.bf16.mxu0 0
    %2083 = vmatpush1.bf16.msra.mxu0 0
    %2084 = vmatprep.subr.bf16.mxu0 0
    %2085 = vmatpush1.bf16.msra.mxu0 0
    %2086 = vmatprep.subr.bf16.mxu0 0
    %2087 = vmatpush1.bf16.msra.mxu0 0
    %2088 = vmatprep.subr.bf16.mxu0 0
    %2089 = vmatpush1.bf16.msra.mxu0 0
    %2090 = vmatprep.subr.bf16.mxu0 0
    %2091 = vmatpush1.bf16.msra.mxu0 0
    %2092 = vmatprep.mubr.bf16.mxu0 0
    %2093 = vmatmul.mubr.bf16.gmra.mrb[0].mxu0 %v2059
    %v2094 = vpop.f32.mrb[0].mxu0
    %v2095 = vadd.f32 %v427, %v2094
    %v2096 = vpop.f32.mrb[0].mxu0
    %v2097 = vadd.f32 %v431, %v2096
    %v2098 = vpop.f32.mrb[0].mxu0
    %v2099 = vpop.f32.mrb[0].mxu0
    %2100 = vdwg.mxu0
    %2101 = vmatprep.subr.bf16.mxu0 %v543
    %2102 = vmatpush1.bf16.msra.mxu0 %v542
    %2103 = vmatprep.subr.bf16.mxu0 %v547
    %2104 = vmatpush1.bf16.msra.mxu0 %v546
    %2105 = vmatprep.subr.bf16.mxu0 %v551
    %2106 = vmatpush1.bf16.msra.mxu0 %v550
    %2107 = vmatprep.subr.bf16.mxu0 %v555
    %2108 = vmatpush1.bf16.msra.mxu0 %v554
    %2109 = vmatprep.subr.bf16.mxu0 %v559
    %2110 = vmatpush1.bf16.msra.mxu0 %v558
    %2111 = vmatprep.subr.bf16.mxu0 %v563
    %2112 = vmatpush1.bf16.msra.mxu0 %v562
    %2113 = vmatprep.subr.bf16.mxu0 %v567
    %2114 = vmatpush1.bf16.msra.mxu0 %v566
    %2115 = vmatprep.subr.bf16.mxu0 %v571
    %2116 = vmatpush1.bf16.msra.mxu0 %v570
    %2117 = vmatprep.subr.bf16.mxu0 0
    %2118 = vmatpush1.bf16.msra.mxu0 0
    %2119 = vmatprep.subr.bf16.mxu0 0
    %2120 = vmatpush1.bf16.msra.mxu0 0
    %2121 = vmatprep.subr.bf16.mxu0 0
    %2122 = vmatpush1.bf16.msra.mxu0 0
    %2123 = vmatprep.subr.bf16.mxu0 0
    %2124 = vmatpush1.bf16.msra.mxu0 0
    %2125 = vmatprep.subr.bf16.mxu0 0
    %2126 = vmatpush1.bf16.msra.mxu0 0
    %2127 = vmatprep.subr.bf16.mxu0 0
    %2128 = vmatpush1.bf16.msra.mxu0 0
    %2129 = vmatprep.subr.bf16.mxu0 0
    %2130 = vmatpush1.bf16.msra.mxu0 0
    %2131 = vmatprep.subr.bf16.mxu0 0
    %2132 = vmatpush1.bf16.msra.mxu0 0
    %2133 = vmatprep.mubr.bf16.mxu0 0
    %2134 = vmatmul.mubr.bf16.gmra.mrb[0].mxu0 %v2059
    %v2135 = vpop.f32.mrb[0].mxu0
    %v2136 = vadd.f32 %v435, %v2135
    %v2137 = vpop.f32.mrb[0].mxu0
    %v2138 = vadd.f32 %v439, %v2137
    %v2139 = vpop.f32.mrb[0].mxu0
    %v2140 = vpop.f32.mrb[0].mxu0
    %2141 = vdwg.mxu0
    %v2142 = vxor.u32 %v2095, 2147483648
    %v2143 = vmul.f32 %v2142, 1.442695
    %v2144 = vpow.pop %v2143
    %v2145 = vadd.f32 %v2144, 1.0
    %v2146 = vrcp.pop %v2145
    %v2147 = vmul.f32 1.0, %v2146
    %v2148 = vxor.u32 %v2097, 2147483648
    %v2149 = vmul.f32 %v2148, 1.442695
    %v2150 = vpow.pop %v2149
    %v2151 = vadd.f32 %v2150, 1.0
    %v2152 = vrcp.pop %v2151
    %v2153 = vmul.f32 1.0, %v2152
    %v2154 = vmul.f32 %v2147, %v2138
    %v2155 = vadd.f32 %v2136, %v2154
    %v2156 = vtanh.pop %v2155
    %v2157 = vsub.f32 1.0, %v2153
    %v2158 = vmul.f32 %v2157, %v2156
    %v2159 = vmul.f32 %v2153, %v1952
    %v2160 = vadd.f32 %v2158, %v2159
    %v2161 = vld [vmem:[%s5] sm:$0x1]
    %v2163 = vlaneseq
    %v2164 = vshrl.u32 %v2163, 7
    %v2165 = vsub.s32 0, %v2164
    %v2166 = vrot.slane %v2161, %v2165
    %v2168 = vmul.f32 %v2160, %v2166
    %vm2169 = vcmask 1041408
    %v2170 = vsel %vm2169, %v2168, 0.0
    %2171 = vadd.xlane.f32.xlu0 %v2170
    %v2172 = vpop.xlane.xlu0 %2171
    %v2173 = vld [vmem:[#allocation2] sm:$0x1]
    %v2175 = vlaneseq
    %v2176 = vshrl.u32 %v2175, 7
    %v2177 = vsub.s32 0, %v2176
    %v2178 = vrot.slane %v2173, %v2177
    %v2180 = vadd.f32 %v2172, %v2178
    %vm2181 = vcmask 1024
    %2182 = vst.msk [vmem:[%s7] sm:$0x3] %vm2181, %v2180
    // Predicated region
    $region42: #{tpu_custom_call.1} parent=1 // pred_check
      _
    $region43: #{tpu_custom_call.1} parent=1 // pred_check_branch
      %2184 = sbr.rel (0) target = $region45
    $region44: #{tpu_custom_call.1} parent=1 // pred_region
      _
    $region45: #{tpu_custom_call.1} parent=1 // pred_fallthru
      _
    // Predicated region
    $region46: #{tpu_custom_call.1} parent=1 // pred_check
      _
    $region47: #{tpu_custom_call.1} parent=1 // pred_check_branch
      %2186 = sbr.rel (0) target = $region49
    $region48: #{tpu_custom_call.1} parent=1 // pred_region
      _
    $region49: #{tpu_custom_call.1} parent=1 // pred_fallthru
      _
    %2187 = vsyncpa [#allocation4], 1
    %2188 = vsyncpa [#allocation6], 1

</llo_original>
